<compile_context>
chip_gen: v5e
topology: v5e:2x2
jax: 0.10.0
libtpu: 0.0.40
codegen_flags: <defaults>
</compile_context>

<pallas_src>
import numpy as np
import jax
import jax.numpy as jnp
from jax.experimental import pallas as pl
from jax.experimental.pallas import tpu as pltpu


# ---------------------------------------------------------------------------
# Constant-matrix builders (numpy, executed once at trace/compile time).
# ---------------------------------------------------------------------------
def _pool_matrix(L, s):
    """(s, L) AdaptiveAvgPool1d matrix with PyTorch bin semantics."""
    P = np.zeros((s, L), dtype=np.float32)
    for i in range(s):
        a = (i * L) // s
        b = -((-(i + 1) * L) // s)          # ceil((i+1)*L/s)
        P[i, a:b] = 1.0 / (b - a)
    return P


def _interp_matrix(L, s):
    """(L, s) 1-D linear interpolation matrix, align_corners=True (s -> L)."""
    U = np.zeros((L, s), dtype=np.float32)
    if s == 1:
        U[:, 0] = 1.0
        return U
    for i in range(L):
        t = i * (s - 1) / (L - 1) if L > 1 else 0.0
        j0 = min(int(np.floor(t)), s - 1)
        j1 = min(j0 + 1, s - 1)
        f = t - j0
        U[i, j0] += 1.0 - f
        U[i, j1] += f
    return U


def _pool_sizes(w):
    sizes = [1, 2, 3, 5]
    if w > 15:
        sizes.append(10)
    if w > 30:
        sizes.append(15)
    if w > 60:
        sizes.append(30)
    return sizes


# ---------------------------------------------------------------------------
# Pallas kernel
# ---------------------------------------------------------------------------
def _cmpa2_kernel(y_ref, x_ref, mt_ref, b_ref, o_ref):
    # y_ref, x_ref, o_ref : (1, C, HW) VMEM tiles (one batch element, lane-dense)
    # mt_ref              : (HW, HW) folded attention operator (conv+BN weights
    #                       and the 1/C of the channel mean already folded in)
    # b_ref               : (1,) SMEM scalar (folded conv bias + BN shift)
    yv = y_ref[0]                                   # (C, HW)
    xv = x_ref[0]                                   # (C, HW)

    ysum = jnp.sum(yv, axis=0, keepdims=True)       # (1, HW) channel sum
    att = jnp.dot(ysum, mt_ref[...],
                  preferred_element_type=jnp.float32,
                  precision=jax.lax.Precision.HIGHEST) + b_ref[0]
    att = jnp.maximum(att, 0.0)                     # ReLU -> (1, HW)

    o_ref[0] = xv * att + yv                        # broadcast gate over channels


# ---------------------------------------------------------------------------
# Wrapper
# ---------------------------------------------------------------------------
def cmpa2_forward(y, x, conv_w, conv_b, bn_gamma, bn_beta, bn_mean, bn_var,
                  eps=1e-5):
    """CMPA2.forward(y, x) with BatchNorm folded using running stats (eval mode).

    y, x    : (N, C, H, W) float32
    conv_w  : (ch,)  weights of Conv2d(ch, 1, kernel_size=1)  (ch = 1 + #pools)
    conv_b  : (1,)   conv bias
    bn_*    : (1,)   BatchNorm2d(1) gamma/beta/running_mean/running_var
    """
    N, C, H, W = y.shape
    assert x.shape == y.shape
    HW = H * W
    sizes = _pool_sizes(W)
    ch = len(sizes) + 1
    assert conv_w.shape == (ch,)

    # ---- fold BatchNorm (inference) into the 1x1 conv ---------------------
    # TODO(synk): training-mode BatchNorm (batch statistics) is not implemented;
    #             BN is folded with running stats (standard inference forward).
    scale = bn_gamma / jnp.sqrt(bn_var + eps)                   # (1,)
    w_eff = conv_w.astype(jnp.float32) * scale                  # (ch,)
    b_eff = conv_b * scale + (bn_beta - bn_mean * scale)        # (1,)

    # ---- fold the whole pooling pyramid into one (HW, HW) operator --------
    # Each branch is separable:  up(pool(y1)) = Bh @ y1 @ Bw^T  ==  (Bh (x) Bw) y1_flat
    # TODO(synk): for very large H*W the dense (HW,HW) operator exceeds VMEM;
    #             switch to the separable per-scale (H,H)/(W,W) form in-kernel.
    basis = [np.eye(HW, dtype=np.float32)]                      # identity branch (y1 itself)
    for s in sizes:
        Bh = _interp_matrix(H, s) @ _pool_matrix(H, s)          # (H, H)
        Bw = _interp_matrix(W, s) @ _pool_matrix(W, s)          # (W, W)
        basis.append(np.kron(Bh, Bw).astype(np.float32))        # (HW, HW)
    basis = jnp.asarray(np.stack(basis, axis=0))                # (ch, HW, HW)

    # m[p, q]: att_flat[p] = sum_q m[p, q] * y1_flat[q] + b_eff  (elementwise fold, full f32)
    m = jnp.sum(w_eff[:, None, None] * basis, axis=0)           # (HW, HW)
    mt = (m.T / C).astype(jnp.float32)                          # fold 1/C channel mean

    # ---- NCHW-native, lane-dense layout (last dim = H*W); reshape is free --
    y3 = y.reshape(N, C, HW).astype(jnp.float32)
    x3 = x.reshape(N, C, HW).astype(jnp.float32)
    b_arr = b_eff.reshape(1).astype(jnp.float32)

    cost = pl.CostEstimate(
        flops=int(2 * N * HW * HW + 5 * N * C * HW),
        transcendentals=0,
        bytes_accessed=int((3 * N * C * HW + HW * HW) * 4),
    )

    out = pl.pallas_call(
        _cmpa2_kernel,
        out_shape=jax.ShapeDtypeStruct((N, C, HW), jnp.float32),
        grid_spec=pltpu.PrefetchScalarGridSpec(
            num_scalar_prefetch=0,
            grid=(N,),
            in_specs=[
                pl.BlockSpec((1, C, HW), lambda n: (n, 0, 0)),       # y tile
                pl.BlockSpec((1, C, HW), lambda n: (n, 0, 0)),       # x tile
                pl.BlockSpec((HW, HW), lambda n: (0, 0)),            # folded operator (grid-invariant)
                pl.BlockSpec(memory_space=pltpu.MemorySpace.SMEM),   # folded bias scalar
            ],
            out_specs=pl.BlockSpec((1, C, HW), lambda n: (n, 0, 0)),
        ),
        compiler_params=pltpu.CompilerParams(
            dimension_semantics=("parallel",),
        ),
        cost_estimate=cost,
    )(y3, x3, mt, b_arr)

    return out.reshape(N, C, H, W)


# ---------------------------------------------------------------------------
# Pure-JAX reference (direct pooling/upsampling, independent of the fold)
# ---------------------------------------------------------------------------
def _ref_adaptive_avg_pool(y1, s):
    N, _, H, W = y1.shape
    rows = []
    for i in range(s):
        h0 = (i * H) // s
        h1 = -((-(i + 1) * H) // s)
        cols = []
        for j in range(s):
            w0 = (j * W) // s
            w1 = -((-(j + 1) * W) // s)
            cols.append(jnp.mean(y1[:, :, h0:h1, w0:w1], axis=(2, 3)))
        rows.append(jnp.stack(cols, axis=-1))
    return jnp.stack(rows, axis=-2)                      # (N, 1, s, s)


def _ref_upsample_bilinear_ac(p, H, W):
    N, _, s, _ = p.shape

    def coords(out_len, in_len):
        if in_len == 1 or out_len == 1:
            i0 = jnp.zeros((out_len,), jnp.int32)
            return i0, i0, jnp.zeros((out_len,), jnp.float32)
        t = jnp.arange(out_len, dtype=jnp.float32) * (in_len - 1) / (out_len - 1)
        i0 = jnp.clip(jnp.floor(t).astype(jnp.int32), 0, in_len - 1)
        i1 = jnp.clip(i0 + 1, 0, in_len - 1)
        return i0, i1, t - i0.astype(jnp.float32)

    h0, h1, fh = coords(H, s)
    w0, w1, fw = coords(W, s)
    a = (p[:, :, h0, :] * (1.0 - fh)[None, None, :, None]
         + p[:, :, h1, :] * fh[None, None, :, None])                 # (N,1,H,s)
    b = (a[:, :, :, w0] * (1.0 - fw)[None, None, None, :]
         + a[:, :, :, w1] * fw[None, None, None, :])                 # (N,1,H,W)
    return b


def cmpa2_reference(y, x, conv_w, conv_b, bn_gamma, bn_beta, bn_mean, bn_var,
                    eps=1e-5):
    N, C, H, W = y.shape
    sizes = _pool_sizes(W)
    y1 = jnp.mean(y, axis=1, keepdims=True)              # (N,1,H,W)
    feats = [y1]
    for s in sizes:
        feats.append(_ref_upsample_bilinear_ac(_ref_adaptive_avg_pool(y1, s), H, W))
    y2 = jnp.concatenate(feats, axis=1)                  # (N, ch, H, W)
    conv = jnp.sum(y2 * conv_w[None, :, None, None], axis=1) + conv_b[0]
    bn = (conv - bn_mean[0]) / jnp.sqrt(bn_var[0] + eps) * bn_gamma[0] + bn_beta[0]
    att = jnp.maximum(bn, 0.0)[:, None, :, :]
    return x * att + y


# ---------------------------------------------------------------------------
if __name__ == "__main__":
    key = jax.random.PRNGKey(0)
    N, C, H, W = 2, 4, 16, 16
    ch = len(_pool_sizes(W)) + 1                         # = 6 for W=16

    kx, ky, kw, kb, kg, kbe, km, kv = jax.random.split(key, 8)
    y = jax.random.normal(ky, (N, C, H, W), dtype=jnp.float32)
    x = jax.random.normal(kx, (N, C, H, W), dtype=jnp.float32)
    conv_w = jax.random.normal(kw, (ch,), dtype=jnp.float32) * 0.5
    conv_b = jax.random.normal(kb, (1,), dtype=jnp.float32) * 0.1
    bn_gamma = 1.0 + 0.5 * jax.random.normal(kg, (1,), dtype=jnp.float32)
    bn_beta = 0.1 * jax.random.normal(kbe, (1,), dtype=jnp.float32)
    bn_mean = 0.1 * jax.random.normal(km, (1,), dtype=jnp.float32)
    bn_var = jax.random.uniform(kv, (1,), jnp.float32, 0.5, 1.5)

    out = cmpa2_forward(y, x, conv_w, conv_b, bn_gamma, bn_beta, bn_mean, bn_var)
    out = jax.block_until_ready(out)

    ref = cmpa2_reference(y, x, conv_w, conv_b, bn_gamma, bn_beta, bn_mean, bn_var)
    assert out.shape == (N, C, H, W)
    max_err = float(jnp.max(jnp.abs(out - ref)))
    assert jnp.allclose(out, ref, atol=1e-3, rtol=1e-3), f"max abs err = {max_err}"

    print("KERNEL_OK")
</pallas_src>

<mosaic_0001>
module attributes {stable_mosaic.version = 11 : i64} {
  func.func @_cmpa2_kernel(%arg0: i32, %arg1: memref<1x4x256xf32, #tpu.memory_space<vmem>>, %arg2: memref<1x4x256xf32, #tpu.memory_space<vmem>>, %arg3: memref<256x256xf32, #tpu.memory_space<vmem>>, %arg4: memref<1xf32, #tpu.memory_space<smem>>, %arg5: memref<1x4x256xf32, #tpu.memory_space<vmem>>) attributes {dimension_semantics = [#tpu.dimension_semantics<parallel>], iteration_bounds = array<i64: 2>, scalar_prefetch = 0 : i64, scratch_operands = 0 : i64, tpu.core_type = #tpu.core_type<tc>, window_params = [{transform_indices = @transform_0, window_bounds = array<i64: 1, 4, 256>}, {transform_indices = @transform_1, window_bounds = array<i64: 1, 4, 256>}, {pipeline_mode = #tpu.pipeline_mode<synchronous>, transform_indices = @transform_2, window_bounds = array<i64: 256, 256>}, {transform_indices = @transform_3, window_bounds = array<i64: 1>}, {transform_indices = @transform_4, window_bounds = array<i64: 1, 4, 256>}]} {
    %c0 = arith.constant 0 : index
    %c0_0 = arith.constant 0 : index
    %c0_1 = arith.constant 0 : index
    %0 = vector.load %arg1[%c0, %c0_0, %c0_1] : memref<1x4x256xf32, #tpu.memory_space<vmem>>, vector<1x4x256xf32>
    %1 = vector.shape_cast %0 : vector<1x4x256xf32> to vector<4x256xf32>
    %c0_2 = arith.constant 0 : index
    %c0_3 = arith.constant 0 : index
    %c0_4 = arith.constant 0 : index
    %2 = vector.load %arg2[%c0_2, %c0_3, %c0_4] : memref<1x4x256xf32, #tpu.memory_space<vmem>>, vector<1x4x256xf32>
    %3 = vector.shape_cast %2 : vector<1x4x256xf32> to vector<4x256xf32>
    %cst = arith.constant dense<0.000000e+00> : vector<256xf32>
    %4 = vector.multi_reduction <add>, %1, %cst [0] : vector<4x256xf32> to vector<256xf32>
    %5 = vector.shape_cast %4 : vector<256xf32> to vector<1x256xf32>
    %c0_5 = arith.constant 0 : index
    %c0_6 = arith.constant 0 : index
    %6 = vector.load %arg3[%c0_5, %c0_6] : memref<256x256xf32, #tpu.memory_space<vmem>>, vector<256x256xf32>
    %cst_7 = arith.constant dense<0.000000e+00> : vector<1x256xf32>
    %7 = tpu.matmul %5, %6, %cst_7 {dimension_numbers = #tpu.dot_dimension_numbers<[1], [0], [0], [1], [0, 0, 1, 1], [], []>, precision = #tpu.contract_precision<fp32>} : vector<1x256xf32>, vector<256x256xf32>, vector<1x256xf32> -> vector<1x256xf32>
    %c0_8 = arith.constant 0 : index
    %8 = memref.load %arg4[%c0_8] : memref<1xf32, #tpu.memory_space<smem>>
    %9 = vector.broadcast %8 : f32 to vector<1x256xf32>
    %10 = arith.addf %7, %9 : vector<1x256xf32>
    %cst_9 = arith.constant 0.000000e+00 : f32
    %11 = vector.broadcast %cst_9 : f32 to vector<1x256xf32>
    %12 = arith.maximumf %10, %11 : vector<1x256xf32>
    %13 = vector.broadcast %12 : vector<1x256xf32> to vector<4x256xf32>
    %14 = arith.mulf %3, %13 : vector<4x256xf32>
    %15 = arith.addf %14, %1 : vector<4x256xf32>
    %c0_10 = arith.constant 0 : index
    %c0_11 = arith.constant 0 : index
    %c0_12 = arith.constant 0 : index
    %16 = vector.load %arg5[%c0_10, %c0_11, %c0_12] : memref<1x4x256xf32, #tpu.memory_space<vmem>>, vector<1x4x256xf32>
    %17 = vector.shape_cast %16 : vector<1x4x256xf32> to vector<4x256xf32>
    %18 = vector.shape_cast %15 : vector<4x256xf32> to vector<1x4x256xf32>
    tpu.vector_store %arg5[%c0_10, %c0_11, %c0_12], %18 {strides = array<i32>} : memref<1x4x256xf32, #tpu.memory_space<vmem>>, vector<1x4x256xf32>,
    return
  }
  func.func @transform_0(%arg0: i32) -> (i32, i32, i32) {
    %c0_i32 = arith.constant 0 : i32
    %c0_i32_0 = arith.constant 0 : i32
    %c0_i32_1 = arith.constant 0 : i32
    return %arg0, %c0_i32, %c0_i32_0 : i32, i32, i32
  }
  func.func @transform_1(%arg0: i32) -> (i32, i32, i32) {
    %c0_i32 = arith.constant 0 : i32
    %c0_i32_0 = arith.constant 0 : i32
    %c0_i32_1 = arith.constant 0 : i32
    return %arg0, %c0_i32, %c0_i32_0 : i32, i32, i32
  }
  func.func @transform_2(%arg0: i32) -> (i32, i32) {
    %c0_i32 = arith.constant 0 : i32
    %c0_i32_0 = arith.constant 0 : i32
    %c0_i32_1 = arith.constant 0 : i32
    return %c0_i32, %c0_i32_0 : i32, i32
  }
  func.func @transform_3(%arg0: i32) -> i32 {
    %c0_i32 = arith.constant 0 : i32
    %c0_i32_0 = arith.constant 0 : i32
    return %c0_i32 : i32
  }
  func.func @transform_4(%arg0: i32) -> (i32, i32, i32) {
    %c0_i32 = arith.constant 0 : i32
    %c0_i32_0 = arith.constant 0 : i32
    %c0_i32_1 = arith.constant 0 : i32
    return %arg0, %c0_i32, %c0_i32_0 : i32, i32, i32
  }
}

</mosaic_0001>

<llo_original>
// kernel: tpu_custom_call.1
$region0: #{tpu_custom_call.1}
  #allocation0 [shape = 'u32[]', space=smem, size = 0x4, offset = 0x4, fixed_abs, tag = 'smem constant byte address 0x4 - core index']
  #allocation1 [shape = 'u32[72,128]{1,0:T(1,128)}', space=vmem, size = 0x9000, scoped, tag = 'internal scratch']
  #allocation2 [shape = 'f32[1]{0:T(128)S(6)}', space=smem, size = 0x200, scoped, tag = 'scoped memory for tpu_custom_call.1']
  %s0 = inlined_call_operand.hbm [shape: f32[2,4,256], index: 0, kind: input, shape index: {}]
  %s1 = inlined_call_operand.hbm [shape: f32[2,4,256], index: 1, kind: input, shape index: {}]
  %s2 = inlined_call_operand.hbm [shape: f32[256,256], index: 2, kind: input, shape index: {}]
  %s3 = inlined_call_operand.<no memory space> [shape: f32[1], index: 3, kind: input, shape index: {}]
  %s4 = inlined_call_operand.hbm [shape: f32[2,4,256], index: 4, kind: output, shape index: {}]
  %s5 = sld [smem:[#allocation0]]
  $region61: #{tpu_custom_call.1} parent=0
    _
  %s7 = ssub.s32 1, %s5
  %s8 = scalar_select 0, %s7, %s5
  %9 = sst [smem:[#allocation2]] %s3
  $region1: #{tpu_custom_call.1} parent=0
    #allocation3 [shape = 'u8[8192]{0}', space=vmem, size = 0x2000, scoped, tag = 'input window, operand 0']
    #allocation4 [shape = 's32[2]{0}', space=sflag, size = 0x8, scoped, tag = 'scoped memory for tpu_custom_call.1']
    #allocation5 [shape = 's32[2]{0}', space=sflag, size = 0x8, scoped, tag = 'scoped memory for tpu_custom_call.1']
    #allocation6 [shape = 'u8[8192]{0}', space=vmem, size = 0x2000, scoped, tag = 'input window, operand 1']
    #allocation7 [shape = 's32[2]{0}', space=sflag, size = 0x8, scoped, tag = 'scoped memory for tpu_custom_call.1']
    #allocation8 [shape = 'u8[262144]{0}', space=vmem, size = 0x40000, scoped, tag = 'input window, operand 2, single buffered']
    #allocation9 [shape = 'u8[8192]{0}', space=vmem, size = 0x2000, scoped, tag = 'output window, operand 0']
    %10 = vsyncpa [#allocation4], 0
    %s11 = scalar_lea.sflag [#allocation4], 1
    %12 = vsyncpa %s11, 0
    %13 = vsyncpa [#allocation7], 0
    %s14 = scalar_lea.sflag [#allocation7], 1
    %15 = vsyncpa %s14, 0
    %16 = vsyncpa [#allocation5], 0
    %s17 = scalar_lea.sflag [#allocation5], 1
    %18 = vsyncpa %s17, 0
    loop: start=0, step=1, limit=4
    $region2: #{tpu_custom_call.1} parent=1 // loop_pre_header
      _
    $region3: #{tpu_custom_call.1} parent=1 // loop_header
      %s20 = sphi 0, %s24
      %p21 = scmp.ge.s32.totalorder %s20, 4
      %s30 = sphi 0, %s32
      %s33 = sphi 0, %s30
      %s34 = sphi 0, %s33
      %s50 = sphi 0, %s34
      %s56 = sphi 0, %s58
      %s59 = sphi 0, %s56
      %s60 = sphi 0, %s59
      %s76 = sphi 0, %s60
      %s80 = sphi 0, %s80
      %s82 = sphi 0, %s80
      %s83 = sphi 0, %s82
      %s97 = sphi 0, %s83
      %s101 = sphi 0, %s101
      %s103 = sphi 0, %s101
      %s104 = sphi 0, %s103
      %s118 = sphi 0, %s104
      %s124 = sphi 0, %s126
      %s127 = sphi 0, %s124
      %s128 = sphi 0, %s127
      %s144 = sphi 0, %s128
    $region4: #{tpu_custom_call.1} parent=1 // loop_header_branch
      %23 = sbr.rel (%p21) target = $region8
    $region5: #{tpu_custom_call.1} parent=1 // loop_body
      %s25 = ssub.s32 %s20, 1
      %s26 = ssub.s32 %s20, 2
      %s27 = sadd.s32 %s20, 1
      %s28 = ssub.s32 %s20, %s27
      %p29 = scmp.eq.s32.totalorder %s28, 0
      %s31 = sadd.s32 %s30, 1
      %s32 = scalar_select %p29, %s30, %s31
      %p35 = pneg %p29
      %p36 = scmp.eq.s32.totalorder %s20, 1
      %p37 = por %p35, %p36
      %p38 = scmp.ne.s32.totalorder %s30, %s33
      %p39 = scmp.eq.s32.totalorder %s20, 0
      %p40 = por %p38, %p39
      %p41 = scmp.ne.s32.totalorder %s30, %s33
      %p42 = scmp.eq.s32.totalorder %s25, 1
      %p43 = por %p41, %p42
      %p44 = scmp.ne.s32.totalorder %s33, %s34
      %p45 = scmp.eq.s32.totalorder %s25, 0
      %p46 = por %p44, %p45
      %p47 = scmp.ne.s32.totalorder %s33, %s34
      %p48 = scmp.eq.s32.totalorder %s26, 1
      %p49 = por %p47, %p48
      %p51 = scmp.ne.s32.totalorder %s34, %s50
      %p52 = scmp.eq.s32.totalorder %s26, 0
      %p53 = por %p51, %p52
      %s54 = ssub.s32 %s20, %s27
      %p55 = scmp.eq.s32.totalorder %s54, 0
      %s57 = sadd.s32 %s56, 1
      %s58 = scalar_select %p55, %s56, %s57
      %p61 = pneg %p55
      %p62 = scmp.eq.s32.totalorder %s20, 1
      %p63 = por %p61, %p62
      %p64 = scmp.ne.s32.totalorder %s56, %s59
      %p65 = scmp.eq.s32.totalorder %s20, 0
      %p66 = por %p64, %p65
      %p67 = scmp.ne.s32.totalorder %s56, %s59
      %p68 = scmp.eq.s32.totalorder %s25, 1
      %p69 = por %p67, %p68
      %p70 = scmp.ne.s32.totalorder %s59, %s60
      %p71 = scmp.eq.s32.totalorder %s25, 0
      %p72 = por %p70, %p71
      %p73 = scmp.ne.s32.totalorder %s59, %s60
      %p74 = scmp.eq.s32.totalorder %s26, 1
      %p75 = por %p73, %p74
      %p77 = scmp.ne.s32.totalorder %s60, %s76
      %p78 = scmp.eq.s32.totalorder %s26, 0
      %p79 = por %p77, %p78
      %s81 = sadd.s32 %s80, 1
      %p84 = scmp.eq.s32.totalorder %s20, 1
      %p85 = scmp.ne.s32.totalorder %s80, %s82
      %p86 = scmp.eq.s32.totalorder %s20, 0
      %p87 = por %p85, %p86
      %p88 = scmp.ne.s32.totalorder %s80, %s82
      %p89 = scmp.eq.s32.totalorder %s25, 1
      %p90 = por %p88, %p89
      %p91 = scmp.ne.s32.totalorder %s82, %s83
      %p92 = scmp.eq.s32.totalorder %s25, 0
      %p93 = por %p91, %p92
      %p94 = scmp.ne.s32.totalorder %s82, %s83
      %p95 = scmp.eq.s32.totalorder %s26, 1
      %p96 = por %p94, %p95
      %p98 = scmp.ne.s32.totalorder %s83, %s97
      %p99 = scmp.eq.s32.totalorder %s26, 0
      %p100 = por %p98, %p99
      %s102 = sadd.s32 %s101, 1
      %p105 = scmp.eq.s32.totalorder %s20, 1
      %p106 = scmp.ne.s32.totalorder %s101, %s103
      %p107 = scmp.eq.s32.totalorder %s20, 0
      %p108 = por %p106, %p107
      %p109 = scmp.ne.s32.totalorder %s101, %s103
      %p110 = scmp.eq.s32.totalorder %s25, 1
      %p111 = por %p109, %p110
      %p112 = scmp.ne.s32.totalorder %s103, %s104
      %p113 = scmp.eq.s32.totalorder %s25, 0
      %p114 = por %p112, %p113
      %p115 = scmp.ne.s32.totalorder %s103, %s104
      %p116 = scmp.eq.s32.totalorder %s26, 1
      %p117 = por %p115, %p116
      %p119 = scmp.ne.s32.totalorder %s104, %s118
      %p120 = scmp.eq.s32.totalorder %s26, 0
      %p121 = por %p119, %p120
      %s122 = ssub.s32 %s20, %s27
      %p123 = scmp.eq.s32.totalorder %s122, 0
      %s125 = sadd.s32 %s124, 1
      %s126 = scalar_select %p123, %s124, %s125
      %p129 = pneg %p123
      %p130 = scmp.eq.s32.totalorder %s20, 1
      %p131 = por %p129, %p130
      %p132 = scmp.ne.s32.totalorder %s124, %s127
      %p133 = scmp.eq.s32.totalorder %s20, 0
      %p134 = por %p132, %p133
      %p135 = scmp.ne.s32.totalorder %s124, %s127
      %p136 = scmp.eq.s32.totalorder %s25, 1
      %p137 = por %p135, %p136
      %p138 = scmp.ne.s32.totalorder %s127, %s128
      %p139 = scmp.eq.s32.totalorder %s25, 0
      %p140 = por %p138, %p139
      %p141 = scmp.ne.s32.totalorder %s127, %s128
      %p142 = scmp.eq.s32.totalorder %s26, 1
      %p143 = por %p141, %p142
      %p145 = scmp.ne.s32.totalorder %s128, %s144
      %p146 = scmp.eq.s32.totalorder %s26, 0
      %p147 = por %p145, %p146
      %p148 = scmp.le.s32.totalorder 1, %s20
      %p149 = scmp.lt.s32.totalorder %s20, 3
      %p150 = pnand %p148, %p149
      %p151 = pneg %p150
      // Predicated region
      $region9: #{tpu_custom_call.1} parent=5 // pred_check
        _
      $region10: #{tpu_custom_call.1} parent=5 // pred_check_branch
        %153 = sbr.rel (%p150) target = $region12
      $region11: #{tpu_custom_call.1} parent=5 // pred_region
        %s154 = ssub.s32 %s20, 1
        // Predicated region
        $region13: #{tpu_custom_call.1} parent=11 // pred_check
          %p155 = pneg %p93
        $region14: #{tpu_custom_call.1} parent=11 // pred_check_branch
          %157 = sbr.rel (%p155) target = $region16
        $region15: #{tpu_custom_call.1} parent=11 // pred_region
          %159 = vsyncadd [#allocation7], 0
          %s160 = sshll.u32 %s2, 4
          %s161 = int_to_ptr.hbm [resolvable:$true] %s160
          %s162 = sshll.u32 [#allocation8], 4
          %s163 = int_to_ptr.vmem [resolvable:$true] %s162
          %168 = dma.hbm_to_vmem [thread:$0]  %s161, 8192, %s163, [#allocation7], 256, 256, 16
        $region16: #{tpu_custom_call.1} parent=11 // pred_fallthru
          _
        // Predicated region
        $region17: #{tpu_custom_call.1} parent=11 // pred_check
          %p169 = pneg %p114
        $region18: #{tpu_custom_call.1} parent=11 // pred_check_branch
          %171 = sbr.rel (%p169) target = $region20
        $region19: #{tpu_custom_call.1} parent=11 // pred_region
          _
        $region20: #{tpu_custom_call.1} parent=11 // pred_fallthru
          _
      $region12: #{tpu_custom_call.1} parent=5 // pred_fallthru
        _
      %p172 = scmp.lt.s32.totalorder %s20, 2
      // Predicated region
      $region21: #{tpu_custom_call.1} parent=5 // pred_check
        %p173 = pneg %p172
      $region22: #{tpu_custom_call.1} parent=5 // pred_check_branch
        %175 = sbr.rel (%p173) target = $region24
      $region23: #{tpu_custom_call.1} parent=5 // pred_region
        // Predicated region
        $region25: #{tpu_custom_call.1} parent=23 // pred_check
          %p176 = pneg %p40
        $region26: #{tpu_custom_call.1} parent=23 // pred_check_branch
          %178 = sbr.rel (%p176) target = $region28
        $region27: #{tpu_custom_call.1} parent=23 // pred_region
          %s179 = sand.u32 %s30, 1
          %s180 = scalar_lea.sflag [#allocation4], %s179
          %s181 = sand.u32 %s30, 1
          %s182 = smul.addr %s181, 8
          %s183 = scalar_lea.vmem [#allocation3], %s182
          %185 = vsyncadd %s180, 0
          %s186 = smul.addr %s20, 2
          %s187 = smul.addr %s186, 4
          %s188 = scalar_lea.hbm %s0, %s187
          %s190 = sshll.u32 %s188, 4
          %s191 = int_to_ptr.hbm [resolvable:$true] %s190
          %s192 = sshll.u32 %s183, 4
          %s193 = int_to_ptr.vmem [resolvable:$true] %s192
          %195 = dma.hbm_to_vmem [thread:$0]  %s191, 128, %s193, %s180
        $region28: #{tpu_custom_call.1} parent=23 // pred_fallthru
          _
        // Predicated region
        $region29: #{tpu_custom_call.1} parent=23 // pred_check
          %p196 = pneg %p66
        $region30: #{tpu_custom_call.1} parent=23 // pred_check_branch
          %198 = sbr.rel (%p196) target = $region32
        $region31: #{tpu_custom_call.1} parent=23 // pred_region
          %s199 = sand.u32 %s20, 1
          %s200 = scalar_lea.sflag [#allocation7], %s199
          %s201 = sand.u32 %s56, 1
          %s202 = smul.addr %s201, 8
          %s203 = scalar_lea.vmem [#allocation6], %s202
          %205 = vsyncadd %s200, 0
          %s206 = smul.addr %s20, 2
          %s207 = smul.addr %s206, 4
          %s208 = scalar_lea.hbm %s1, %s207
          %s210 = sshll.u32 %s208, 4
          %s211 = int_to_ptr.hbm [resolvable:$true] %s210
          %s212 = sshll.u32 %s203, 4
          %s213 = int_to_ptr.vmem [resolvable:$true] %s212
          %215 = dma.hbm_to_vmem [thread:$0]  %s211, 128, %s213, %s200
        $region32: #{tpu_custom_call.1} parent=23 // pred_fallthru
          _
      $region24: #{tpu_custom_call.1} parent=5 // pred_fallthru
        _
      %p216 = scmp.le.s32.totalorder 1, %s20
      %p217 = scmp.lt.s32.totalorder %s20, 3
      %p218 = pnand %p216, %p217
      %p219 = pneg %p218
      // Predicated region
      $region33: #{tpu_custom_call.1} parent=5 // pred_check
        _
      $region34: #{tpu_custom_call.1} parent=5 // pred_check_branch
        %221 = sbr.rel (%p218) target = $region36
      $region35: #{tpu_custom_call.1} parent=5 // pred_region
        %s222 = ssub.s32 %s20, 1
        %s223 = sand.u32 %s33, 1
        %s224 = scalar_lea.sflag [#allocation4], %s223
        %s225 = sand.u32 %s33, 1
        %s226 = smul.addr %s225, 8
        %s227 = scalar_lea.vmem [#allocation3], %s226
        // Predicated region
        $region37: #{tpu_custom_call.1} parent=35 // pred_check
          %p228 = pneg %p46
        $region38: #{tpu_custom_call.1} parent=35 // pred_check_branch
          %230 = sbr.rel (%p228) target = $region40
        $region39: #{tpu_custom_call.1} parent=35 // pred_region
          %232 = dma.done %s224, 128
        $region40: #{tpu_custom_call.1} parent=35 // pred_fallthru
          _
        %s233 = sand.u32 %s25, 1
        %s234 = scalar_lea.sflag [#allocation7], %s233
        %s235 = sand.u32 %s59, 1
        %s236 = smul.addr %s235, 8
        %s237 = scalar_lea.vmem [#allocation6], %s236
        // Predicated region
        $region41: #{tpu_custom_call.1} parent=35 // pred_check
          %p238 = pneg %p72
        $region42: #{tpu_custom_call.1} parent=35 // pred_check_branch
          %240 = sbr.rel (%p238) target = $region44
        $region43: #{tpu_custom_call.1} parent=35 // pred_region
          %242 = dma.done %s234, 128
        $region44: #{tpu_custom_call.1} parent=35 // pred_fallthru
          _
        // Predicated region
        $region45: #{tpu_custom_call.1} parent=35 // pred_check
          %p243 = pneg %p93
        $region46: #{tpu_custom_call.1} parent=35 // pred_check_branch
          %245 = sbr.rel (%p243) target = $region48
        $region47: #{tpu_custom_call.1} parent=35 // pred_region
          %247 = dma.done [#allocation7], 8192
        $region48: #{tpu_custom_call.1} parent=35 // pred_fallthru
          _
        %s248 = sand.u32 %s33, 1
        %s249 = scalar_lea.sflag [#allocation4], %s248
        %s250 = sand.u32 %s33, 1
        %s251 = smul.addr %s250, 8
        %s252 = scalar_lea.vmem [#allocation3], %s251
        %p253 = pneg %p46
        %p254 = pneg %p43
        %s255 = sand.u32 %s25, 1
        %s256 = scalar_lea.sflag [#allocation7], %s255
        %s257 = sand.u32 %s59, 1
        %s258 = smul.addr %s257, 8
        %s259 = scalar_lea.vmem [#allocation6], %s258
        %p260 = pneg %p72
        %p261 = pneg %p69
        %p262 = pneg %p93
        %p263 = pneg %p90
        %p264 = pneg %p114
        %p265 = pneg %p111
        %p266 = pneg %p140
        %p267 = pneg %p137
        %s268 = sand.u32 %s127, 1
        %s269 = scalar_lea.sflag [#allocation5], %s268
        %s270 = sand.u32 %s127, 1
        %s271 = smul.addr %s270, 8
        %s272 = scalar_lea.vmem [#allocation9], %s271
        %v273 = vld [vmem:[%s227] sm:$0xff]
        %v274 = vld [vmem:[%s237] sm:$0xff]
        %276 = vst [vmem:[#allocation1] ss:$2 sm:$0xff] %v273
        %v277 = vld.sshfl [vmem:[#allocation1] sm:$0xff pattern:$0x75316420]
        %v278 = vld.sshfl [vmem:[#allocation1 + $0x8] sm:$0xff pattern:$0x75316420]
        %vm281 = vcmask 1043456
        %v282 = vsel %vm281, %v277, 0.0
        %v283 = vrot.slane %v282, 4
        %v284 = vadd.f32 %v282, %v283
        %v285 = vrot.slane %v284, 2
        %v286 = vadd.f32 %v284, %v285
        %v287 = vrot.slane %v286, 1
        %v288 = vadd.f32 %v286, %v287
        %v289 = vsel %vm281, %v278, 0.0
        %v290 = vrot.slane %v289, 4
        %v291 = vadd.f32 %v289, %v290
        %v292 = vrot.slane %v291, 2
        %v293 = vadd.f32 %v291, %v292
        %v294 = vrot.slane %v293, 1
        %v295 = vadd.f32 %v293, %v294
        %v296 = vld [vmem:[#allocation8] sm:$0xff]
        %v297 = vld [vmem:[#allocation8 + $0x8] sm:$0xff]
        %v298 = vld [vmem:[#allocation8 + $0x10] sm:$0xff]
        %v299 = vld [vmem:[#allocation8 + $0x18] sm:$0xff]
        %v300 = vld [vmem:[#allocation8 + $0x20] sm:$0xff]
        %v301 = vld [vmem:[#allocation8 + $0x28] sm:$0xff]
        %v302 = vld [vmem:[#allocation8 + $0x30] sm:$0xff]
        %v303 = vld [vmem:[#allocation8 + $0x38] sm:$0xff]
        %v304 = vld [vmem:[#allocation8 + $0x40] sm:$0xff]
        %v305 = vld [vmem:[#allocation8 + $0x48] sm:$0xff]
        %v306 = vld [vmem:[#allocation8 + $0x50] sm:$0xff]
        %v307 = vld [vmem:[#allocation8 + $0x58] sm:$0xff]
        %v308 = vld [vmem:[#allocation8 + $0x60] sm:$0xff]
        %v309 = vld [vmem:[#allocation8 + $0x68] sm:$0xff]
        %v310 = vld [vmem:[#allocation8 + $0x70] sm:$0xff]
        %v311 = vld [vmem:[#allocation8 + $0x78] sm:$0xff]
        %v312 = vld [vmem:[#allocation8 + $0x80] sm:$0xff]
        %v313 = vld [vmem:[#allocation8 + $0x88] sm:$0xff]
        %v314 = vld [vmem:[#allocation8 + $0x90] sm:$0xff]
        %v315 = vld [vmem:[#allocation8 + $0x98] sm:$0xff]
        %v316 = vld [vmem:[#allocation8 + $0xa0] sm:$0xff]
        %v317 = vld [vmem:[#allocation8 + $0xa8] sm:$0xff]
        %v318 = vld [vmem:[#allocation8 + $0xb0] sm:$0xff]
        %v319 = vld [vmem:[#allocation8 + $0xb8] sm:$0xff]
        %v320 = vld [vmem:[#allocation8 + $0xc0] sm:$0xff]
        %v321 = vld [vmem:[#allocation8 + $0xc8] sm:$0xff]
        %v322 = vld [vmem:[#allocation8 + $0xd0] sm:$0xff]
        %v323 = vld [vmem:[#allocation8 + $0xd8] sm:$0xff]
        %v324 = vld [vmem:[#allocation8 + $0xe0] sm:$0xff]
        %v325 = vld [vmem:[#allocation8 + $0xe8] sm:$0xff]
        %v326 = vld [vmem:[#allocation8 + $0xf0] sm:$0xff]
        %v327 = vld [vmem:[#allocation8 + $0xf8] sm:$0xff]
        %v328 = vld [vmem:[#allocation8 + $0x100] sm:$0xff]
        %v329 = vld [vmem:[#allocation8 + $0x108] sm:$0xff]
        %v330 = vld [vmem:[#allocation8 + $0x110] sm:$0xff]
        %v331 = vld [vmem:[#allocation8 + $0x118] sm:$0xff]
        %v332 = vld [vmem:[#allocation8 + $0x120] sm:$0xff]
        %v333 = vld [vmem:[#allocation8 + $0x128] sm:$0xff]
        %v334 = vld [vmem:[#allocation8 + $0x130] sm:$0xff]
        %v335 = vld [vmem:[#allocation8 + $0x138] sm:$0xff]
        %v336 = vld [vmem:[#allocation8 + $0x140] sm:$0xff]
        %v337 = vld [vmem:[#allocation8 + $0x148] sm:$0xff]
        %v338 = vld [vmem:[#allocation8 + $0x150] sm:$0xff]
        %v339 = vld [vmem:[#allocation8 + $0x158] sm:$0xff]
        %v340 = vld [vmem:[#allocation8 + $0x160] sm:$0xff]
        %v341 = vld [vmem:[#allocation8 + $0x168] sm:$0xff]
        %v342 = vld [vmem:[#allocation8 + $0x170] sm:$0xff]
        %v343 = vld [vmem:[#allocation8 + $0x178] sm:$0xff]
        %v344 = vld [vmem:[#allocation8 + $0x180] sm:$0xff]
        %v345 = vld [vmem:[#allocation8 + $0x188] sm:$0xff]
        %v346 = vld [vmem:[#allocation8 + $0x190] sm:$0xff]
        %v347 = vld [vmem:[#allocation8 + $0x198] sm:$0xff]
        %v348 = vld [vmem:[#allocation8 + $0x1a0] sm:$0xff]
        %v349 = vld [vmem:[#allocation8 + $0x1a8] sm:$0xff]
        %v350 = vld [vmem:[#allocation8 + $0x1b0] sm:$0xff]
        %v351 = vld [vmem:[#allocation8 + $0x1b8] sm:$0xff]
        %v352 = vld [vmem:[#allocation8 + $0x1c0] sm:$0xff]
        %v353 = vld [vmem:[#allocation8 + $0x1c8] sm:$0xff]
        %v354 = vld [vmem:[#allocation8 + $0x1d0] sm:$0xff]
        %v355 = vld [vmem:[#allocation8 + $0x1d8] sm:$0xff]
        %v356 = vld [vmem:[#allocation8 + $0x1e0] sm:$0xff]
        %v357 = vld [vmem:[#allocation8 + $0x1e8] sm:$0xff]
        %v358 = vld [vmem:[#allocation8 + $0x1f0] sm:$0xff]
        %v359 = vld [vmem:[#allocation8 + $0x1f8] sm:$0xff]
        %s360 = sld [smem:[#allocation2]]
        %v361 = vstv %s360
        %v362 = vand.u32 %v326, 4294901760
        %363 = vmatpush.msra.mxu0 %v362
        %v364 = vand.u32 %v324, 4294901760
        %365 = vmatpush.msra.mxu0 %v364
        %v366 = vand.u32 %v322, 4294901760
        %367 = vmatpush.msra.mxu0 %v366
        %v368 = vand.u32 %v320, 4294901760
        %369 = vmatpush.msra.mxu0 %v368
        %v370 = vand.u32 %v318, 4294901760
        %371 = vmatpush.msra.mxu0 %v370
        %v372 = vand.u32 %v316, 4294901760
        %373 = vmatpush.msra.mxu0 %v372
        %v374 = vand.u32 %v314, 4294901760
        %375 = vmatpush.msra.mxu0 %v374
        %v376 = vand.u32 %v312, 4294901760
        %377 = vmatpush.msra.mxu0 %v376
        %v378 = vand.u32 %v310, 4294901760
        %379 = vmatpush.msra.mxu0 %v378
        %v380 = vand.u32 %v308, 4294901760
        %381 = vmatpush.msra.mxu0 %v380
        %v382 = vand.u32 %v306, 4294901760
        %383 = vmatpush.msra.mxu0 %v382
        %v384 = vand.u32 %v304, 4294901760
        %385 = vmatpush.msra.mxu0 %v384
        %v386 = vand.u32 %v302, 4294901760
        %387 = vmatpush.msra.mxu0 %v386
        %v388 = vand.u32 %v300, 4294901760
        %389 = vmatpush.msra.mxu0 %v388
        %v390 = vand.u32 %v298, 4294901760
        %391 = vmatpush.msra.mxu0 %v390
        %v392 = vand.u32 %v296, 4294901760
        %393 = vmatpush.msra.mxu0 %v392
        %v394 = vand.u32 %v288, 4294901760
        %v395 = vsub.f32 %v288, %v394
        %v396 = vand.u32 %v395, 4294901760
        %v397 = vsub.f32 %v395, %v396
        %v398 = vand.u32 %v397, 4294901760
        %399 = vmatmul.f32.gmra.mxu0 %v398
        %v400 = vpop.f32.mrf.mxu0
        %v401 = vadd.f32 %v361, %v400
        %402 = vdwg.mxu0
        %v403 = vand.u32 %v326, 4294901760
        %v404 = vsub.f32 %v326, %v403
        %v405 = vand.u32 %v404, 4294901760
        %v406 = vsub.f32 %v404, %v405
        %v407 = vand.u32 %v406, 4294901760
        %408 = vmatpush.msra.mxu0 %v407
        %v409 = vand.u32 %v324, 4294901760
        %v410 = vsub.f32 %v324, %v409
        %v411 = vand.u32 %v410, 4294901760
        %v412 = vsub.f32 %v410, %v411
        %v413 = vand.u32 %v412, 4294901760
        %414 = vmatpush.msra.mxu0 %v413
        %v415 = vand.u32 %v322, 4294901760
        %v416 = vsub.f32 %v322, %v415
        %v417 = vand.u32 %v416, 4294901760
        %v418 = vsub.f32 %v416, %v417
        %v419 = vand.u32 %v418, 4294901760
        %420 = vmatpush.msra.mxu0 %v419
        %v421 = vand.u32 %v320, 4294901760
        %v422 = vsub.f32 %v320, %v421
        %v423 = vand.u32 %v422, 4294901760
        %v424 = vsub.f32 %v422, %v423
        %v425 = vand.u32 %v424, 4294901760
        %426 = vmatpush.msra.mxu0 %v425
        %v427 = vand.u32 %v318, 4294901760
        %v428 = vsub.f32 %v318, %v427
        %v429 = vand.u32 %v428, 4294901760
        %v430 = vsub.f32 %v428, %v429
        %v431 = vand.u32 %v430, 4294901760
        %432 = vmatpush.msra.mxu0 %v431
        %v433 = vand.u32 %v316, 4294901760
        %v434 = vsub.f32 %v316, %v433
        %v435 = vand.u32 %v434, 4294901760
        %v436 = vsub.f32 %v434, %v435
        %v437 = vand.u32 %v436, 4294901760
        %438 = vmatpush.msra.mxu0 %v437
        %v439 = vand.u32 %v314, 4294901760
        %v440 = vsub.f32 %v314, %v439
        %v441 = vand.u32 %v440, 4294901760
        %v442 = vsub.f32 %v440, %v441
        %v443 = vand.u32 %v442, 4294901760
        %444 = vmatpush.msra.mxu0 %v443
        %v445 = vand.u32 %v312, 4294901760
        %v446 = vsub.f32 %v312, %v445
        %v447 = vand.u32 %v446, 4294901760
        %v448 = vsub.f32 %v446, %v447
        %v449 = vand.u32 %v448, 4294901760
        %450 = vmatpush.msra.mxu0 %v449
        %v451 = vand.u32 %v310, 4294901760
        %v452 = vsub.f32 %v310, %v451
        %v453 = vand.u32 %v452, 4294901760
        %v454 = vsub.f32 %v452, %v453
        %v455 = vand.u32 %v454, 4294901760
        %456 = vmatpush.msra.mxu0 %v455
        %v457 = vand.u32 %v308, 4294901760
        %v458 = vsub.f32 %v308, %v457
        %v459 = vand.u32 %v458, 4294901760
        %v460 = vsub.f32 %v458, %v459
        %v461 = vand.u32 %v460, 4294901760
        %462 = vmatpush.msra.mxu0 %v461
        %v463 = vand.u32 %v306, 4294901760
        %v464 = vsub.f32 %v306, %v463
        %v465 = vand.u32 %v464, 4294901760
        %v466 = vsub.f32 %v464, %v465
        %v467 = vand.u32 %v466, 4294901760
        %468 = vmatpush.msra.mxu0 %v467
        %v469 = vand.u32 %v304, 4294901760
        %v470 = vsub.f32 %v304, %v469
        %v471 = vand.u32 %v470, 4294901760
        %v472 = vsub.f32 %v470, %v471
        %v473 = vand.u32 %v472, 4294901760
        %474 = vmatpush.msra.mxu0 %v473
        %v475 = vand.u32 %v302, 4294901760
        %v476 = vsub.f32 %v302, %v475
        %v477 = vand.u32 %v476, 4294901760
        %v478 = vsub.f32 %v476, %v477
        %v479 = vand.u32 %v478, 4294901760
        %480 = vmatpush.msra.mxu0 %v479
        %v481 = vand.u32 %v300, 4294901760
        %v482 = vsub.f32 %v300, %v481
        %v483 = vand.u32 %v482, 4294901760
        %v484 = vsub.f32 %v482, %v483
        %v485 = vand.u32 %v484, 4294901760
        %486 = vmatpush.msra.mxu0 %v485
        %v487 = vand.u32 %v298, 4294901760
        %v488 = vsub.f32 %v298, %v487
        %v489 = vand.u32 %v488, 4294901760
        %v490 = vsub.f32 %v488, %v489
        %v491 = vand.u32 %v490, 4294901760
        %492 = vmatpush.msra.mxu0 %v491
        %v493 = vand.u32 %v296, 4294901760
        %v494 = vsub.f32 %v296, %v493
        %v495 = vand.u32 %v494, 4294901760
        %v496 = vsub.f32 %v494, %v495
        %v497 = vand.u32 %v496, 4294901760
        %498 = vmatpush.msra.mxu0 %v497
        %v499 = vand.u32 %v288, 4294901760
        %500 = vmatmul.f32.gmra.mxu0 %v499
        %v501 = vpop.f32.mrf.mxu0
        %v502 = vadd.f32 %v401, %v501
        %503 = vdwg.mxu0
        %v504 = vand.u32 %v326, 4294901760
        %v505 = vsub.f32 %v326, %v504
        %506 = vmatpush.msra.mxu0 %v505
        %v507 = vand.u32 %v324, 4294901760
        %v508 = vsub.f32 %v324, %v507
        %509 = vmatpush.msra.mxu0 %v508
        %v510 = vand.u32 %v322, 4294901760
        %v511 = vsub.f32 %v322, %v510
        %512 = vmatpush.msra.mxu0 %v511
        %v513 = vand.u32 %v320, 4294901760
        %v514 = vsub.f32 %v320, %v513
        %515 = vmatpush.msra.mxu0 %v514
        %v516 = vand.u32 %v318, 4294901760
        %v517 = vsub.f32 %v318, %v516
        %518 = vmatpush.msra.mxu0 %v517
        %v519 = vand.u32 %v316, 4294901760
        %v520 = vsub.f32 %v316, %v519
        %521 = vmatpush.msra.mxu0 %v520
        %v522 = vand.u32 %v314, 4294901760
        %v523 = vsub.f32 %v314, %v522
        %524 = vmatpush.msra.mxu0 %v523
        %v525 = vand.u32 %v312, 4294901760
        %v526 = vsub.f32 %v312, %v525
        %527 = vmatpush.msra.mxu0 %v526
        %v528 = vand.u32 %v310, 4294901760
        %v529 = vsub.f32 %v310, %v528
        %530 = vmatpush.msra.mxu0 %v529
        %v531 = vand.u32 %v308, 4294901760
        %v532 = vsub.f32 %v308, %v531
        %533 = vmatpush.msra.mxu0 %v532
        %v534 = vand.u32 %v306, 4294901760
        %v535 = vsub.f32 %v306, %v534
        %536 = vmatpush.msra.mxu0 %v535
        %v537 = vand.u32 %v304, 4294901760
        %v538 = vsub.f32 %v304, %v537
        %539 = vmatpush.msra.mxu0 %v538
        %v540 = vand.u32 %v302, 4294901760
        %v541 = vsub.f32 %v302, %v540
        %542 = vmatpush.msra.mxu0 %v541
        %v543 = vand.u32 %v300, 4294901760
        %v544 = vsub.f32 %v300, %v543
        %545 = vmatpush.msra.mxu0 %v544
        %v546 = vand.u32 %v298, 4294901760
        %v547 = vsub.f32 %v298, %v546
        %548 = vmatpush.msra.mxu0 %v547
        %v549 = vand.u32 %v296, 4294901760
        %v550 = vsub.f32 %v296, %v549
        %551 = vmatpush.msra.mxu0 %v550
        %v552 = vand.u32 %v288, 4294901760
        %v553 = vsub.f32 %v288, %v552
        %554 = vmatmul.f32.gmra.mxu0 %v553
        %v555 = vpop.f32.mrf.mxu0
        %v556 = vadd.f32 %v502, %v555
        %557 = vdwg.mxu0
        %v558 = vand.u32 %v326, 4294901760
        %559 = vmatpush.msra.mxu0 %v558
        %v560 = vand.u32 %v324, 4294901760
        %561 = vmatpush.msra.mxu0 %v560
        %v562 = vand.u32 %v322, 4294901760
        %563 = vmatpush.msra.mxu0 %v562
        %v564 = vand.u32 %v320, 4294901760
        %565 = vmatpush.msra.mxu0 %v564
        %v566 = vand.u32 %v318, 4294901760
        %567 = vmatpush.msra.mxu0 %v566
        %v568 = vand.u32 %v316, 4294901760
        %569 = vmatpush.msra.mxu0 %v568
        %v570 = vand.u32 %v314, 4294901760
        %571 = vmatpush.msra.mxu0 %v570
        %v572 = vand.u32 %v312, 4294901760
        %573 = vmatpush.msra.mxu0 %v572
        %v574 = vand.u32 %v310, 4294901760
        %575 = vmatpush.msra.mxu0 %v574
        %v576 = vand.u32 %v308, 4294901760
        %577 = vmatpush.msra.mxu0 %v576
        %v578 = vand.u32 %v306, 4294901760
        %579 = vmatpush.msra.mxu0 %v578
        %v580 = vand.u32 %v304, 4294901760
        %581 = vmatpush.msra.mxu0 %v580
        %v582 = vand.u32 %v302, 4294901760
        %583 = vmatpush.msra.mxu0 %v582
        %v584 = vand.u32 %v300, 4294901760
        %585 = vmatpush.msra.mxu0 %v584
        %v586 = vand.u32 %v298, 4294901760
        %587 = vmatpush.msra.mxu0 %v586
        %v588 = vand.u32 %v296, 4294901760
        %589 = vmatpush.msra.mxu0 %v588
        %v590 = vand.u32 %v288, 4294901760
        %v591 = vsub.f32 %v288, %v590
        %v592 = vand.u32 %v591, 4294901760
        %593 = vmatmul.f32.gmra.mxu0 %v592
        %v594 = vpop.f32.mrf.mxu0
        %v595 = vadd.f32 %v556, %v594
        %596 = vdwg.mxu0
        %v597 = vand.u32 %v326, 4294901760
        %v598 = vsub.f32 %v326, %v597
        %v599 = vand.u32 %v598, 4294901760
        %600 = vmatpush.msra.mxu0 %v599
        %v601 = vand.u32 %v324, 4294901760
        %v602 = vsub.f32 %v324, %v601
        %v603 = vand.u32 %v602, 4294901760
        %604 = vmatpush.msra.mxu0 %v603
        %v605 = vand.u32 %v322, 4294901760
        %v606 = vsub.f32 %v322, %v605
        %v607 = vand.u32 %v606, 4294901760
        %608 = vmatpush.msra.mxu0 %v607
        %v609 = vand.u32 %v320, 4294901760
        %v610 = vsub.f32 %v320, %v609
        %v611 = vand.u32 %v610, 4294901760
        %612 = vmatpush.msra.mxu0 %v611
        %v613 = vand.u32 %v318, 4294901760
        %v614 = vsub.f32 %v318, %v613
        %v615 = vand.u32 %v614, 4294901760
        %616 = vmatpush.msra.mxu0 %v615
        %v617 = vand.u32 %v316, 4294901760
        %v618 = vsub.f32 %v316, %v617
        %v619 = vand.u32 %v618, 4294901760
        %620 = vmatpush.msra.mxu0 %v619
        %v621 = vand.u32 %v314, 4294901760
        %v622 = vsub.f32 %v314, %v621
        %v623 = vand.u32 %v622, 4294901760
        %624 = vmatpush.msra.mxu0 %v623
        %v625 = vand.u32 %v312, 4294901760
        %v626 = vsub.f32 %v312, %v625
        %v627 = vand.u32 %v626, 4294901760
        %628 = vmatpush.msra.mxu0 %v627
        %v629 = vand.u32 %v310, 4294901760
        %v630 = vsub.f32 %v310, %v629
        %v631 = vand.u32 %v630, 4294901760
        %632 = vmatpush.msra.mxu0 %v631
        %v633 = vand.u32 %v308, 4294901760
        %v634 = vsub.f32 %v308, %v633
        %v635 = vand.u32 %v634, 4294901760
        %636 = vmatpush.msra.mxu0 %v635
        %v637 = vand.u32 %v306, 4294901760
        %v638 = vsub.f32 %v306, %v637
        %v639 = vand.u32 %v638, 4294901760
        %640 = vmatpush.msra.mxu0 %v639
        %v641 = vand.u32 %v304, 4294901760
        %v642 = vsub.f32 %v304, %v641
        %v643 = vand.u32 %v642, 4294901760
        %644 = vmatpush.msra.mxu0 %v643
        %v645 = vand.u32 %v302, 4294901760
        %v646 = vsub.f32 %v302, %v645
        %v647 = vand.u32 %v646, 4294901760
        %648 = vmatpush.msra.mxu0 %v647
        %v649 = vand.u32 %v300, 4294901760
        %v650 = vsub.f32 %v300, %v649
        %v651 = vand.u32 %v650, 4294901760
        %652 = vmatpush.msra.mxu0 %v651
        %v653 = vand.u32 %v298, 4294901760
        %v654 = vsub.f32 %v298, %v653
        %v655 = vand.u32 %v654, 4294901760
        %656 = vmatpush.msra.mxu0 %v655
        %v657 = vand.u32 %v296, 4294901760
        %v658 = vsub.f32 %v296, %v657
        %v659 = vand.u32 %v658, 4294901760
        %660 = vmatpush.msra.mxu0 %v659
        %v661 = vand.u32 %v288, 4294901760
        %662 = vmatmul.f32.gmra.mxu0 %v661
        %v663 = vpop.f32.mrf.mxu0
        %v664 = vadd.f32 %v595, %v663
        %665 = vdwg.mxu0
        %v666 = vand.u32 %v326, 4294901760
        %667 = vmatpush.msra.mxu0 %v666
        %v668 = vand.u32 %v324, 4294901760
        %669 = vmatpush.msra.mxu0 %v668
        %v670 = vand.u32 %v322, 4294901760
        %671 = vmatpush.msra.mxu0 %v670
        %v672 = vand.u32 %v320, 4294901760
        %673 = vmatpush.msra.mxu0 %v672
        %v674 = vand.u32 %v318, 4294901760
        %675 = vmatpush.msra.mxu0 %v674
        %v676 = vand.u32 %v316, 4294901760
        %677 = vmatpush.msra.mxu0 %v676
        %v678 = vand.u32 %v314, 4294901760
        %679 = vmatpush.msra.mxu0 %v678
        %v680 = vand.u32 %v312, 4294901760
        %681 = vmatpush.msra.mxu0 %v680
        %v682 = vand.u32 %v310, 4294901760
        %683 = vmatpush.msra.mxu0 %v682
        %v684 = vand.u32 %v308, 4294901760
        %685 = vmatpush.msra.mxu0 %v684
        %v686 = vand.u32 %v306, 4294901760
        %687 = vmatpush.msra.mxu0 %v686
        %v688 = vand.u32 %v304, 4294901760
        %689 = vmatpush.msra.mxu0 %v688
        %v690 = vand.u32 %v302, 4294901760
        %691 = vmatpush.msra.mxu0 %v690
        %v692 = vand.u32 %v300, 4294901760
        %693 = vmatpush.msra.mxu0 %v692
        %v694 = vand.u32 %v298, 4294901760
        %695 = vmatpush.msra.mxu0 %v694
        %v696 = vand.u32 %v296, 4294901760
        %697 = vmatpush.msra.mxu0 %v696
        %v698 = vand.u32 %v288, 4294901760
        %699 = vmatmul.f32.gmra.mxu0 %v698
        %v700 = vpop.f32.mrf.mxu0
        %v701 = vadd.f32 %v664, %v700
        %702 = vdwg.mxu0
        %v703 = vand.u32 %v358, 4294901760
        %704 = vmatpush.msra.mxu0 %v703
        %v705 = vand.u32 %v356, 4294901760
        %706 = vmatpush.msra.mxu0 %v705
        %v707 = vand.u32 %v354, 4294901760
        %708 = vmatpush.msra.mxu0 %v707
        %v709 = vand.u32 %v352, 4294901760
        %710 = vmatpush.msra.mxu0 %v709
        %v711 = vand.u32 %v350, 4294901760
        %712 = vmatpush.msra.mxu0 %v711
        %v713 = vand.u32 %v348, 4294901760
        %714 = vmatpush.msra.mxu0 %v713
        %v715 = vand.u32 %v346, 4294901760
        %716 = vmatpush.msra.mxu0 %v715
        %v717 = vand.u32 %v344, 4294901760
        %718 = vmatpush.msra.mxu0 %v717
        %v719 = vand.u32 %v342, 4294901760
        %720 = vmatpush.msra.mxu0 %v719
        %v721 = vand.u32 %v340, 4294901760
        %722 = vmatpush.msra.mxu0 %v721
        %v723 = vand.u32 %v338, 4294901760
        %724 = vmatpush.msra.mxu0 %v723
        %v725 = vand.u32 %v336, 4294901760
        %726 = vmatpush.msra.mxu0 %v725
        %v727 = vand.u32 %v334, 4294901760
        %728 = vmatpush.msra.mxu0 %v727
        %v729 = vand.u32 %v332, 4294901760
        %730 = vmatpush.msra.mxu0 %v729
        %v731 = vand.u32 %v330, 4294901760
        %732 = vmatpush.msra.mxu0 %v731
        %v733 = vand.u32 %v328, 4294901760
        %734 = vmatpush.msra.mxu0 %v733
        %v735 = vand.u32 %v295, 4294901760
        %v736 = vsub.f32 %v295, %v735
        %v737 = vand.u32 %v736, 4294901760
        %v738 = vsub.f32 %v736, %v737
        %v739 = vand.u32 %v738, 4294901760
        %740 = vmatmul.f32.gmra.mxu0 %v739
        %v741 = vpop.f32.mrf.mxu0
        %v742 = vadd.f32 %v701, %v741
        %743 = vdwg.mxu0
        %v744 = vand.u32 %v358, 4294901760
        %v745 = vsub.f32 %v358, %v744
        %v746 = vand.u32 %v745, 4294901760
        %v747 = vsub.f32 %v745, %v746
        %v748 = vand.u32 %v747, 4294901760
        %749 = vmatpush.msra.mxu0 %v748
        %v750 = vand.u32 %v356, 4294901760
        %v751 = vsub.f32 %v356, %v750
        %v752 = vand.u32 %v751, 4294901760
        %v753 = vsub.f32 %v751, %v752
        %v754 = vand.u32 %v753, 4294901760
        %755 = vmatpush.msra.mxu0 %v754
        %v756 = vand.u32 %v354, 4294901760
        %v757 = vsub.f32 %v354, %v756
        %v758 = vand.u32 %v757, 4294901760
        %v759 = vsub.f32 %v757, %v758
        %v760 = vand.u32 %v759, 4294901760
        %761 = vmatpush.msra.mxu0 %v760
        %v762 = vand.u32 %v352, 4294901760
        %v763 = vsub.f32 %v352, %v762
        %v764 = vand.u32 %v763, 4294901760
        %v765 = vsub.f32 %v763, %v764
        %v766 = vand.u32 %v765, 4294901760
        %767 = vmatpush.msra.mxu0 %v766
        %v768 = vand.u32 %v350, 4294901760
        %v769 = vsub.f32 %v350, %v768
        %v770 = vand.u32 %v769, 4294901760
        %v771 = vsub.f32 %v769, %v770
        %v772 = vand.u32 %v771, 4294901760
        %773 = vmatpush.msra.mxu0 %v772
        %v774 = vand.u32 %v348, 4294901760
        %v775 = vsub.f32 %v348, %v774
        %v776 = vand.u32 %v775, 4294901760
        %v777 = vsub.f32 %v775, %v776
        %v778 = vand.u32 %v777, 4294901760
        %779 = vmatpush.msra.mxu0 %v778
        %v780 = vand.u32 %v346, 4294901760
        %v781 = vsub.f32 %v346, %v780
        %v782 = vand.u32 %v781, 4294901760
        %v783 = vsub.f32 %v781, %v782
        %v784 = vand.u32 %v783, 4294901760
        %785 = vmatpush.msra.mxu0 %v784
        %v786 = vand.u32 %v344, 4294901760
        %v787 = vsub.f32 %v344, %v786
        %v788 = vand.u32 %v787, 4294901760
        %v789 = vsub.f32 %v787, %v788
        %v790 = vand.u32 %v789, 4294901760
        %791 = vmatpush.msra.mxu0 %v790
        %v792 = vand.u32 %v342, 4294901760
        %v793 = vsub.f32 %v342, %v792
        %v794 = vand.u32 %v793, 4294901760
        %v795 = vsub.f32 %v793, %v794
        %v796 = vand.u32 %v795, 4294901760
        %797 = vmatpush.msra.mxu0 %v796
        %v798 = vand.u32 %v340, 4294901760
        %v799 = vsub.f32 %v340, %v798
        %v800 = vand.u32 %v799, 4294901760
        %v801 = vsub.f32 %v799, %v800
        %v802 = vand.u32 %v801, 4294901760
        %803 = vmatpush.msra.mxu0 %v802
        %v804 = vand.u32 %v338, 4294901760
        %v805 = vsub.f32 %v338, %v804
        %v806 = vand.u32 %v805, 4294901760
        %v807 = vsub.f32 %v805, %v806
        %v808 = vand.u32 %v807, 4294901760
        %809 = vmatpush.msra.mxu0 %v808
        %v810 = vand.u32 %v336, 4294901760
        %v811 = vsub.f32 %v336, %v810
        %v812 = vand.u32 %v811, 4294901760
        %v813 = vsub.f32 %v811, %v812
        %v814 = vand.u32 %v813, 4294901760
        %815 = vmatpush.msra.mxu0 %v814
        %v816 = vand.u32 %v334, 4294901760
        %v817 = vsub.f32 %v334, %v816
        %v818 = vand.u32 %v817, 4294901760
        %v819 = vsub.f32 %v817, %v818
        %v820 = vand.u32 %v819, 4294901760
        %821 = vmatpush.msra.mxu0 %v820
        %v822 = vand.u32 %v332, 4294901760
        %v823 = vsub.f32 %v332, %v822
        %v824 = vand.u32 %v823, 4294901760
        %v825 = vsub.f32 %v823, %v824
        %v826 = vand.u32 %v825, 4294901760
        %827 = vmatpush.msra.mxu0 %v826
        %v828 = vand.u32 %v330, 4294901760
        %v829 = vsub.f32 %v330, %v828
        %v830 = vand.u32 %v829, 4294901760
        %v831 = vsub.f32 %v829, %v830
        %v832 = vand.u32 %v831, 4294901760
        %833 = vmatpush.msra.mxu0 %v832
        %v834 = vand.u32 %v328, 4294901760
        %v835 = vsub.f32 %v328, %v834
        %v836 = vand.u32 %v835, 4294901760
        %v837 = vsub.f32 %v835, %v836
        %v838 = vand.u32 %v837, 4294901760
        %839 = vmatpush.msra.mxu0 %v838
        %v840 = vand.u32 %v295, 4294901760
        %841 = vmatmul.f32.gmra.mxu0 %v840
        %v842 = vpop.f32.mrf.mxu0
        %v843 = vadd.f32 %v742, %v842
        %844 = vdwg.mxu0
        %v845 = vand.u32 %v358, 4294901760
        %v846 = vsub.f32 %v358, %v845
        %847 = vmatpush.msra.mxu0 %v846
        %v848 = vand.u32 %v356, 4294901760
        %v849 = vsub.f32 %v356, %v848
        %850 = vmatpush.msra.mxu0 %v849
        %v851 = vand.u32 %v354, 4294901760
        %v852 = vsub.f32 %v354, %v851
        %853 = vmatpush.msra.mxu0 %v852
        %v854 = vand.u32 %v352, 4294901760
        %v855 = vsub.f32 %v352, %v854
        %856 = vmatpush.msra.mxu0 %v855
        %v857 = vand.u32 %v350, 4294901760
        %v858 = vsub.f32 %v350, %v857
        %859 = vmatpush.msra.mxu0 %v858
        %v860 = vand.u32 %v348, 4294901760
        %v861 = vsub.f32 %v348, %v860
        %862 = vmatpush.msra.mxu0 %v861
        %v863 = vand.u32 %v346, 4294901760
        %v864 = vsub.f32 %v346, %v863
        %865 = vmatpush.msra.mxu0 %v864
        %v866 = vand.u32 %v344, 4294901760
        %v867 = vsub.f32 %v344, %v866
        %868 = vmatpush.msra.mxu0 %v867
        %v869 = vand.u32 %v342, 4294901760
        %v870 = vsub.f32 %v342, %v869
        %871 = vmatpush.msra.mxu0 %v870
        %v872 = vand.u32 %v340, 4294901760
        %v873 = vsub.f32 %v340, %v872
        %874 = vmatpush.msra.mxu0 %v873
        %v875 = vand.u32 %v338, 4294901760
        %v876 = vsub.f32 %v338, %v875
        %877 = vmatpush.msra.mxu0 %v876
        %v878 = vand.u32 %v336, 4294901760
        %v879 = vsub.f32 %v336, %v878
        %880 = vmatpush.msra.mxu0 %v879
        %v881 = vand.u32 %v334, 4294901760
        %v882 = vsub.f32 %v334, %v881
        %883 = vmatpush.msra.mxu0 %v882
        %v884 = vand.u32 %v332, 4294901760
        %v885 = vsub.f32 %v332, %v884
        %886 = vmatpush.msra.mxu0 %v885
        %v887 = vand.u32 %v330, 4294901760
        %v888 = vsub.f32 %v330, %v887
        %889 = vmatpush.msra.mxu0 %v888
        %v890 = vand.u32 %v328, 4294901760
        %v891 = vsub.f32 %v328, %v890
        %892 = vmatpush.msra.mxu0 %v891
        %v893 = vand.u32 %v295, 4294901760
        %v894 = vsub.f32 %v295, %v893
        %895 = vmatmul.f32.gmra.mxu0 %v894
        %v896 = vpop.f32.mrf.mxu0
        %v897 = vadd.f32 %v843, %v896
        %898 = vdwg.mxu0
        %v899 = vand.u32 %v358, 4294901760
        %900 = vmatpush.msra.mxu0 %v899
        %v901 = vand.u32 %v356, 4294901760
        %902 = vmatpush.msra.mxu0 %v901
        %v903 = vand.u32 %v354, 4294901760
        %904 = vmatpush.msra.mxu0 %v903
        %v905 = vand.u32 %v352, 4294901760
        %906 = vmatpush.msra.mxu0 %v905
        %v907 = vand.u32 %v350, 4294901760
        %908 = vmatpush.msra.mxu0 %v907
        %v909 = vand.u32 %v348, 4294901760
        %910 = vmatpush.msra.mxu0 %v909
        %v911 = vand.u32 %v346, 4294901760
        %912 = vmatpush.msra.mxu0 %v911
        %v913 = vand.u32 %v344, 4294901760
        %914 = vmatpush.msra.mxu0 %v913
        %v915 = vand.u32 %v342, 4294901760
        %916 = vmatpush.msra.mxu0 %v915
        %v917 = vand.u32 %v340, 4294901760
        %918 = vmatpush.msra.mxu0 %v917
        %v919 = vand.u32 %v338, 4294901760
        %920 = vmatpush.msra.mxu0 %v919
        %v921 = vand.u32 %v336, 4294901760
        %922 = vmatpush.msra.mxu0 %v921
        %v923 = vand.u32 %v334, 4294901760
        %924 = vmatpush.msra.mxu0 %v923
        %v925 = vand.u32 %v332, 4294901760
        %926 = vmatpush.msra.mxu0 %v925
        %v927 = vand.u32 %v330, 4294901760
        %928 = vmatpush.msra.mxu0 %v927
        %v929 = vand.u32 %v328, 4294901760
        %930 = vmatpush.msra.mxu0 %v929
        %v931 = vand.u32 %v295, 4294901760
        %v932 = vsub.f32 %v295, %v931
        %v933 = vand.u32 %v932, 4294901760
        %934 = vmatmul.f32.gmra.mxu0 %v933
        %v935 = vpop.f32.mrf.mxu0
        %v936 = vadd.f32 %v897, %v935
        %937 = vdwg.mxu0
        %v938 = vand.u32 %v358, 4294901760
        %v939 = vsub.f32 %v358, %v938
        %v940 = vand.u32 %v939, 4294901760
        %941 = vmatpush.msra.mxu0 %v940
        %v942 = vand.u32 %v356, 4294901760
        %v943 = vsub.f32 %v356, %v942
        %v944 = vand.u32 %v943, 4294901760
        %945 = vmatpush.msra.mxu0 %v944
        %v946 = vand.u32 %v354, 4294901760
        %v947 = vsub.f32 %v354, %v946
        %v948 = vand.u32 %v947, 4294901760
        %949 = vmatpush.msra.mxu0 %v948
        %v950 = vand.u32 %v352, 4294901760
        %v951 = vsub.f32 %v352, %v950
        %v952 = vand.u32 %v951, 4294901760
        %953 = vmatpush.msra.mxu0 %v952
        %v954 = vand.u32 %v350, 4294901760
        %v955 = vsub.f32 %v350, %v954
        %v956 = vand.u32 %v955, 4294901760
        %957 = vmatpush.msra.mxu0 %v956
        %v958 = vand.u32 %v348, 4294901760
        %v959 = vsub.f32 %v348, %v958
        %v960 = vand.u32 %v959, 4294901760
        %961 = vmatpush.msra.mxu0 %v960
        %v962 = vand.u32 %v346, 4294901760
        %v963 = vsub.f32 %v346, %v962
        %v964 = vand.u32 %v963, 4294901760
        %965 = vmatpush.msra.mxu0 %v964
        %v966 = vand.u32 %v344, 4294901760
        %v967 = vsub.f32 %v344, %v966
        %v968 = vand.u32 %v967, 4294901760
        %969 = vmatpush.msra.mxu0 %v968
        %v970 = vand.u32 %v342, 4294901760
        %v971 = vsub.f32 %v342, %v970
        %v972 = vand.u32 %v971, 4294901760
        %973 = vmatpush.msra.mxu0 %v972
        %v974 = vand.u32 %v340, 4294901760
        %v975 = vsub.f32 %v340, %v974
        %v976 = vand.u32 %v975, 4294901760
        %977 = vmatpush.msra.mxu0 %v976
        %v978 = vand.u32 %v338, 4294901760
        %v979 = vsub.f32 %v338, %v978
        %v980 = vand.u32 %v979, 4294901760
        %981 = vmatpush.msra.mxu0 %v980
        %v982 = vand.u32 %v336, 4294901760
        %v983 = vsub.f32 %v336, %v982
        %v984 = vand.u32 %v983, 4294901760
        %985 = vmatpush.msra.mxu0 %v984
        %v986 = vand.u32 %v334, 4294901760
        %v987 = vsub.f32 %v334, %v986
        %v988 = vand.u32 %v987, 4294901760
        %989 = vmatpush.msra.mxu0 %v988
        %v990 = vand.u32 %v332, 4294901760
        %v991 = vsub.f32 %v332, %v990
        %v992 = vand.u32 %v991, 4294901760
        %993 = vmatpush.msra.mxu0 %v992
        %v994 = vand.u32 %v330, 4294901760
        %v995 = vsub.f32 %v330, %v994
        %v996 = vand.u32 %v995, 4294901760
        %997 = vmatpush.msra.mxu0 %v996
        %v998 = vand.u32 %v328, 4294901760
        %v999 = vsub.f32 %v328, %v998
        %v1000 = vand.u32 %v999, 4294901760
        %1001 = vmatpush.msra.mxu0 %v1000
        %v1002 = vand.u32 %v295, 4294901760
        %1003 = vmatmul.f32.gmra.mxu0 %v1002
        %v1004 = vpop.f32.mrf.mxu0
        %v1005 = vadd.f32 %v936, %v1004
        %1006 = vdwg.mxu0
        %v1007 = vand.u32 %v358, 4294901760
        %1008 = vmatpush.msra.mxu0 %v1007
        %v1009 = vand.u32 %v356, 4294901760
        %1010 = vmatpush.msra.mxu0 %v1009
        %v1011 = vand.u32 %v354, 4294901760
        %1012 = vmatpush.msra.mxu0 %v1011
        %v1013 = vand.u32 %v352, 4294901760
        %1014 = vmatpush.msra.mxu0 %v1013
        %v1015 = vand.u32 %v350, 4294901760
        %1016 = vmatpush.msra.mxu0 %v1015
        %v1017 = vand.u32 %v348, 4294901760
        %1018 = vmatpush.msra.mxu0 %v1017
        %v1019 = vand.u32 %v346, 4294901760
        %1020 = vmatpush.msra.mxu0 %v1019
        %v1021 = vand.u32 %v344, 4294901760
        %1022 = vmatpush.msra.mxu0 %v1021
        %v1023 = vand.u32 %v342, 4294901760
        %1024 = vmatpush.msra.mxu0 %v1023
        %v1025 = vand.u32 %v340, 4294901760
        %1026 = vmatpush.msra.mxu0 %v1025
        %v1027 = vand.u32 %v338, 4294901760
        %1028 = vmatpush.msra.mxu0 %v1027
        %v1029 = vand.u32 %v336, 4294901760
        %1030 = vmatpush.msra.mxu0 %v1029
        %v1031 = vand.u32 %v334, 4294901760
        %1032 = vmatpush.msra.mxu0 %v1031
        %v1033 = vand.u32 %v332, 4294901760
        %1034 = vmatpush.msra.mxu0 %v1033
        %v1035 = vand.u32 %v330, 4294901760
        %1036 = vmatpush.msra.mxu0 %v1035
        %v1037 = vand.u32 %v328, 4294901760
        %1038 = vmatpush.msra.mxu0 %v1037
        %v1039 = vand.u32 %v295, 4294901760
        %1040 = vmatmul.f32.gmra.mxu0 %v1039
        %v1041 = vpop.f32.mrf.mxu0
        %v1042 = vadd.f32 %v1005, %v1041
        %1043 = vdwg.mxu0
        %v1044 = vand.u32 %v327, 4294901760
        %1045 = vmatpush.msra.mxu0 %v1044
        %v1046 = vand.u32 %v325, 4294901760
        %1047 = vmatpush.msra.mxu0 %v1046
        %v1048 = vand.u32 %v323, 4294901760
        %1049 = vmatpush.msra.mxu0 %v1048
        %v1050 = vand.u32 %v321, 4294901760
        %1051 = vmatpush.msra.mxu0 %v1050
        %v1052 = vand.u32 %v319, 4294901760
        %1053 = vmatpush.msra.mxu0 %v1052
        %v1054 = vand.u32 %v317, 4294901760
        %1055 = vmatpush.msra.mxu0 %v1054
        %v1056 = vand.u32 %v315, 4294901760
        %1057 = vmatpush.msra.mxu0 %v1056
        %v1058 = vand.u32 %v313, 4294901760
        %1059 = vmatpush.msra.mxu0 %v1058
        %v1060 = vand.u32 %v311, 4294901760
        %1061 = vmatpush.msra.mxu0 %v1060
        %v1062 = vand.u32 %v309, 4294901760
        %1063 = vmatpush.msra.mxu0 %v1062
        %v1064 = vand.u32 %v307, 4294901760
        %1065 = vmatpush.msra.mxu0 %v1064
        %v1066 = vand.u32 %v305, 4294901760
        %1067 = vmatpush.msra.mxu0 %v1066
        %v1068 = vand.u32 %v303, 4294901760
        %1069 = vmatpush.msra.mxu0 %v1068
        %v1070 = vand.u32 %v301, 4294901760
        %1071 = vmatpush.msra.mxu0 %v1070
        %v1072 = vand.u32 %v299, 4294901760
        %1073 = vmatpush.msra.mxu0 %v1072
        %v1074 = vand.u32 %v297, 4294901760
        %1075 = vmatpush.msra.mxu0 %v1074
        %v1076 = vand.u32 %v288, 4294901760
        %v1077 = vsub.f32 %v288, %v1076
        %v1078 = vand.u32 %v1077, 4294901760
        %v1079 = vsub.f32 %v1077, %v1078
        %v1080 = vand.u32 %v1079, 4294901760
        %1081 = vmatmul.f32.gmra.mxu0 %v1080
        %v1082 = vpop.f32.mrf.mxu0
        %v1083 = vadd.f32 %v361, %v1082
        %1084 = vdwg.mxu0
        %v1085 = vand.u32 %v327, 4294901760
        %v1086 = vsub.f32 %v327, %v1085
        %v1087 = vand.u32 %v1086, 4294901760
        %v1088 = vsub.f32 %v1086, %v1087
        %v1089 = vand.u32 %v1088, 4294901760
        %1090 = vmatpush.msra.mxu0 %v1089
        %v1091 = vand.u32 %v325, 4294901760
        %v1092 = vsub.f32 %v325, %v1091
        %v1093 = vand.u32 %v1092, 4294901760
        %v1094 = vsub.f32 %v1092, %v1093
        %v1095 = vand.u32 %v1094, 4294901760
        %1096 = vmatpush.msra.mxu0 %v1095
        %v1097 = vand.u32 %v323, 4294901760
        %v1098 = vsub.f32 %v323, %v1097
        %v1099 = vand.u32 %v1098, 4294901760
        %v1100 = vsub.f32 %v1098, %v1099
        %v1101 = vand.u32 %v1100, 4294901760
        %1102 = vmatpush.msra.mxu0 %v1101
        %v1103 = vand.u32 %v321, 4294901760
        %v1104 = vsub.f32 %v321, %v1103
        %v1105 = vand.u32 %v1104, 4294901760
        %v1106 = vsub.f32 %v1104, %v1105
        %v1107 = vand.u32 %v1106, 4294901760
        %1108 = vmatpush.msra.mxu0 %v1107
        %v1109 = vand.u32 %v319, 4294901760
        %v1110 = vsub.f32 %v319, %v1109
        %v1111 = vand.u32 %v1110, 4294901760
        %v1112 = vsub.f32 %v1110, %v1111
        %v1113 = vand.u32 %v1112, 4294901760
        %1114 = vmatpush.msra.mxu0 %v1113
        %v1115 = vand.u32 %v317, 4294901760
        %v1116 = vsub.f32 %v317, %v1115
        %v1117 = vand.u32 %v1116, 4294901760
        %v1118 = vsub.f32 %v1116, %v1117
        %v1119 = vand.u32 %v1118, 4294901760
        %1120 = vmatpush.msra.mxu0 %v1119
        %v1121 = vand.u32 %v315, 4294901760
        %v1122 = vsub.f32 %v315, %v1121
        %v1123 = vand.u32 %v1122, 4294901760
        %v1124 = vsub.f32 %v1122, %v1123
        %v1125 = vand.u32 %v1124, 4294901760
        %1126 = vmatpush.msra.mxu0 %v1125
        %v1127 = vand.u32 %v313, 4294901760
        %v1128 = vsub.f32 %v313, %v1127
        %v1129 = vand.u32 %v1128, 4294901760
        %v1130 = vsub.f32 %v1128, %v1129
        %v1131 = vand.u32 %v1130, 4294901760
        %1132 = vmatpush.msra.mxu0 %v1131
        %v1133 = vand.u32 %v311, 4294901760
        %v1134 = vsub.f32 %v311, %v1133
        %v1135 = vand.u32 %v1134, 4294901760
        %v1136 = vsub.f32 %v1134, %v1135
        %v1137 = vand.u32 %v1136, 4294901760
        %1138 = vmatpush.msra.mxu0 %v1137
        %v1139 = vand.u32 %v309, 4294901760
        %v1140 = vsub.f32 %v309, %v1139
        %v1141 = vand.u32 %v1140, 4294901760
        %v1142 = vsub.f32 %v1140, %v1141
        %v1143 = vand.u32 %v1142, 4294901760
        %1144 = vmatpush.msra.mxu0 %v1143
        %v1145 = vand.u32 %v307, 4294901760
        %v1146 = vsub.f32 %v307, %v1145
        %v1147 = vand.u32 %v1146, 4294901760
        %v1148 = vsub.f32 %v1146, %v1147
        %v1149 = vand.u32 %v1148, 4294901760
        %1150 = vmatpush.msra.mxu0 %v1149
        %v1151 = vand.u32 %v305, 4294901760
        %v1152 = vsub.f32 %v305, %v1151
        %v1153 = vand.u32 %v1152, 4294901760
        %v1154 = vsub.f32 %v1152, %v1153
        %v1155 = vand.u32 %v1154, 4294901760
        %1156 = vmatpush.msra.mxu0 %v1155
        %v1157 = vand.u32 %v303, 4294901760
        %v1158 = vsub.f32 %v303, %v1157
        %v1159 = vand.u32 %v1158, 4294901760
        %v1160 = vsub.f32 %v1158, %v1159
        %v1161 = vand.u32 %v1160, 4294901760
        %1162 = vmatpush.msra.mxu0 %v1161
        %v1163 = vand.u32 %v301, 4294901760
        %v1164 = vsub.f32 %v301, %v1163
        %v1165 = vand.u32 %v1164, 4294901760
        %v1166 = vsub.f32 %v1164, %v1165
        %v1167 = vand.u32 %v1166, 4294901760
        %1168 = vmatpush.msra.mxu0 %v1167
        %v1169 = vand.u32 %v299, 4294901760
        %v1170 = vsub.f32 %v299, %v1169
        %v1171 = vand.u32 %v1170, 4294901760
        %v1172 = vsub.f32 %v1170, %v1171
        %v1173 = vand.u32 %v1172, 4294901760
        %1174 = vmatpush.msra.mxu0 %v1173
        %v1175 = vand.u32 %v297, 4294901760
        %v1176 = vsub.f32 %v297, %v1175
        %v1177 = vand.u32 %v1176, 4294901760
        %v1178 = vsub.f32 %v1176, %v1177
        %v1179 = vand.u32 %v1178, 4294901760
        %1180 = vmatpush.msra.mxu0 %v1179
        %v1181 = vand.u32 %v288, 4294901760
        %1182 = vmatmul.f32.gmra.mxu0 %v1181
        %v1183 = vpop.f32.mrf.mxu0
        %v1184 = vadd.f32 %v1083, %v1183
        %1185 = vdwg.mxu0
        %v1186 = vand.u32 %v327, 4294901760
        %v1187 = vsub.f32 %v327, %v1186
        %1188 = vmatpush.msra.mxu0 %v1187
        %v1189 = vand.u32 %v325, 4294901760
        %v1190 = vsub.f32 %v325, %v1189
        %1191 = vmatpush.msra.mxu0 %v1190
        %v1192 = vand.u32 %v323, 4294901760
        %v1193 = vsub.f32 %v323, %v1192
        %1194 = vmatpush.msra.mxu0 %v1193
        %v1195 = vand.u32 %v321, 4294901760
        %v1196 = vsub.f32 %v321, %v1195
        %1197 = vmatpush.msra.mxu0 %v1196
        %v1198 = vand.u32 %v319, 4294901760
        %v1199 = vsub.f32 %v319, %v1198
        %1200 = vmatpush.msra.mxu0 %v1199
        %v1201 = vand.u32 %v317, 4294901760
        %v1202 = vsub.f32 %v317, %v1201
        %1203 = vmatpush.msra.mxu0 %v1202
        %v1204 = vand.u32 %v315, 4294901760
        %v1205 = vsub.f32 %v315, %v1204
        %1206 = vmatpush.msra.mxu0 %v1205
        %v1207 = vand.u32 %v313, 4294901760
        %v1208 = vsub.f32 %v313, %v1207
        %1209 = vmatpush.msra.mxu0 %v1208
        %v1210 = vand.u32 %v311, 4294901760
        %v1211 = vsub.f32 %v311, %v1210
        %1212 = vmatpush.msra.mxu0 %v1211
        %v1213 = vand.u32 %v309, 4294901760
        %v1214 = vsub.f32 %v309, %v1213
        %1215 = vmatpush.msra.mxu0 %v1214
        %v1216 = vand.u32 %v307, 4294901760
        %v1217 = vsub.f32 %v307, %v1216
        %1218 = vmatpush.msra.mxu0 %v1217
        %v1219 = vand.u32 %v305, 4294901760
        %v1220 = vsub.f32 %v305, %v1219
        %1221 = vmatpush.msra.mxu0 %v1220
        %v1222 = vand.u32 %v303, 4294901760
        %v1223 = vsub.f32 %v303, %v1222
        %1224 = vmatpush.msra.mxu0 %v1223
        %v1225 = vand.u32 %v301, 4294901760
        %v1226 = vsub.f32 %v301, %v1225
        %1227 = vmatpush.msra.mxu0 %v1226
        %v1228 = vand.u32 %v299, 4294901760
        %v1229 = vsub.f32 %v299, %v1228
        %1230 = vmatpush.msra.mxu0 %v1229
        %v1231 = vand.u32 %v297, 4294901760
        %v1232 = vsub.f32 %v297, %v1231
        %1233 = vmatpush.msra.mxu0 %v1232
        %v1234 = vand.u32 %v288, 4294901760
        %v1235 = vsub.f32 %v288, %v1234
        %1236 = vmatmul.f32.gmra.mxu0 %v1235
        %v1237 = vpop.f32.mrf.mxu0
        %v1238 = vadd.f32 %v1184, %v1237
        %1239 = vdwg.mxu0
        %v1240 = vand.u32 %v327, 4294901760
        %1241 = vmatpush.msra.mxu0 %v1240
        %v1242 = vand.u32 %v325, 4294901760
        %1243 = vmatpush.msra.mxu0 %v1242
        %v1244 = vand.u32 %v323, 4294901760
        %1245 = vmatpush.msra.mxu0 %v1244
        %v1246 = vand.u32 %v321, 4294901760
        %1247 = vmatpush.msra.mxu0 %v1246
        %v1248 = vand.u32 %v319, 4294901760
        %1249 = vmatpush.msra.mxu0 %v1248
        %v1250 = vand.u32 %v317, 4294901760
        %1251 = vmatpush.msra.mxu0 %v1250
        %v1252 = vand.u32 %v315, 4294901760
        %1253 = vmatpush.msra.mxu0 %v1252
        %v1254 = vand.u32 %v313, 4294901760
        %1255 = vmatpush.msra.mxu0 %v1254
        %v1256 = vand.u32 %v311, 4294901760
        %1257 = vmatpush.msra.mxu0 %v1256
        %v1258 = vand.u32 %v309, 4294901760
        %1259 = vmatpush.msra.mxu0 %v1258
        %v1260 = vand.u32 %v307, 4294901760
        %1261 = vmatpush.msra.mxu0 %v1260
        %v1262 = vand.u32 %v305, 4294901760
        %1263 = vmatpush.msra.mxu0 %v1262
        %v1264 = vand.u32 %v303, 4294901760
        %1265 = vmatpush.msra.mxu0 %v1264
        %v1266 = vand.u32 %v301, 4294901760
        %1267 = vmatpush.msra.mxu0 %v1266
        %v1268 = vand.u32 %v299, 4294901760
        %1269 = vmatpush.msra.mxu0 %v1268
        %v1270 = vand.u32 %v297, 4294901760
        %1271 = vmatpush.msra.mxu0 %v1270
        %v1272 = vand.u32 %v288, 4294901760
        %v1273 = vsub.f32 %v288, %v1272
        %v1274 = vand.u32 %v1273, 4294901760
        %1275 = vmatmul.f32.gmra.mxu0 %v1274
        %v1276 = vpop.f32.mrf.mxu0
        %v1277 = vadd.f32 %v1238, %v1276
        %1278 = vdwg.mxu0
        %v1279 = vand.u32 %v327, 4294901760
        %v1280 = vsub.f32 %v327, %v1279
        %v1281 = vand.u32 %v1280, 4294901760
        %1282 = vmatpush.msra.mxu0 %v1281
        %v1283 = vand.u32 %v325, 4294901760
        %v1284 = vsub.f32 %v325, %v1283
        %v1285 = vand.u32 %v1284, 4294901760
        %1286 = vmatpush.msra.mxu0 %v1285
        %v1287 = vand.u32 %v323, 4294901760
        %v1288 = vsub.f32 %v323, %v1287
        %v1289 = vand.u32 %v1288, 4294901760
        %1290 = vmatpush.msra.mxu0 %v1289
        %v1291 = vand.u32 %v321, 4294901760
        %v1292 = vsub.f32 %v321, %v1291
        %v1293 = vand.u32 %v1292, 4294901760
        %1294 = vmatpush.msra.mxu0 %v1293
        %v1295 = vand.u32 %v319, 4294901760
        %v1296 = vsub.f32 %v319, %v1295
        %v1297 = vand.u32 %v1296, 4294901760
        %1298 = vmatpush.msra.mxu0 %v1297
        %v1299 = vand.u32 %v317, 4294901760
        %v1300 = vsub.f32 %v317, %v1299
        %v1301 = vand.u32 %v1300, 4294901760
        %1302 = vmatpush.msra.mxu0 %v1301
        %v1303 = vand.u32 %v315, 4294901760
        %v1304 = vsub.f32 %v315, %v1303
        %v1305 = vand.u32 %v1304, 4294901760
        %1306 = vmatpush.msra.mxu0 %v1305
        %v1307 = vand.u32 %v313, 4294901760
        %v1308 = vsub.f32 %v313, %v1307
        %v1309 = vand.u32 %v1308, 4294901760
        %1310 = vmatpush.msra.mxu0 %v1309
        %v1311 = vand.u32 %v311, 4294901760
        %v1312 = vsub.f32 %v311, %v1311
        %v1313 = vand.u32 %v1312, 4294901760
        %1314 = vmatpush.msra.mxu0 %v1313
        %v1315 = vand.u32 %v309, 4294901760
        %v1316 = vsub.f32 %v309, %v1315
        %v1317 = vand.u32 %v1316, 4294901760
        %1318 = vmatpush.msra.mxu0 %v1317
        %v1319 = vand.u32 %v307, 4294901760
        %v1320 = vsub.f32 %v307, %v1319
        %v1321 = vand.u32 %v1320, 4294901760
        %1322 = vmatpush.msra.mxu0 %v1321
        %v1323 = vand.u32 %v305, 4294901760
        %v1324 = vsub.f32 %v305, %v1323
        %v1325 = vand.u32 %v1324, 4294901760
        %1326 = vmatpush.msra.mxu0 %v1325
        %v1327 = vand.u32 %v303, 4294901760
        %v1328 = vsub.f32 %v303, %v1327
        %v1329 = vand.u32 %v1328, 4294901760
        %1330 = vmatpush.msra.mxu0 %v1329
        %v1331 = vand.u32 %v301, 4294901760
        %v1332 = vsub.f32 %v301, %v1331
        %v1333 = vand.u32 %v1332, 4294901760
        %1334 = vmatpush.msra.mxu0 %v1333
        %v1335 = vand.u32 %v299, 4294901760
        %v1336 = vsub.f32 %v299, %v1335
        %v1337 = vand.u32 %v1336, 4294901760
        %1338 = vmatpush.msra.mxu0 %v1337
        %v1339 = vand.u32 %v297, 4294901760
        %v1340 = vsub.f32 %v297, %v1339
        %v1341 = vand.u32 %v1340, 4294901760
        %1342 = vmatpush.msra.mxu0 %v1341
        %v1343 = vand.u32 %v288, 4294901760
        %1344 = vmatmul.f32.gmra.mxu0 %v1343
        %v1345 = vpop.f32.mrf.mxu0
        %v1346 = vadd.f32 %v1277, %v1345
        %1347 = vdwg.mxu0
        %v1348 = vand.u32 %v327, 4294901760
        %1349 = vmatpush.msra.mxu0 %v1348
        %v1350 = vand.u32 %v325, 4294901760
        %1351 = vmatpush.msra.mxu0 %v1350
        %v1352 = vand.u32 %v323, 4294901760
        %1353 = vmatpush.msra.mxu0 %v1352
        %v1354 = vand.u32 %v321, 4294901760
        %1355 = vmatpush.msra.mxu0 %v1354
        %v1356 = vand.u32 %v319, 4294901760
        %1357 = vmatpush.msra.mxu0 %v1356
        %v1358 = vand.u32 %v317, 4294901760
        %1359 = vmatpush.msra.mxu0 %v1358
        %v1360 = vand.u32 %v315, 4294901760
        %1361 = vmatpush.msra.mxu0 %v1360
        %v1362 = vand.u32 %v313, 4294901760
        %1363 = vmatpush.msra.mxu0 %v1362
        %v1364 = vand.u32 %v311, 4294901760
        %1365 = vmatpush.msra.mxu0 %v1364
        %v1366 = vand.u32 %v309, 4294901760
        %1367 = vmatpush.msra.mxu0 %v1366
        %v1368 = vand.u32 %v307, 4294901760
        %1369 = vmatpush.msra.mxu0 %v1368
        %v1370 = vand.u32 %v305, 4294901760
        %1371 = vmatpush.msra.mxu0 %v1370
        %v1372 = vand.u32 %v303, 4294901760
        %1373 = vmatpush.msra.mxu0 %v1372
        %v1374 = vand.u32 %v301, 4294901760
        %1375 = vmatpush.msra.mxu0 %v1374
        %v1376 = vand.u32 %v299, 4294901760
        %1377 = vmatpush.msra.mxu0 %v1376
        %v1378 = vand.u32 %v297, 4294901760
        %1379 = vmatpush.msra.mxu0 %v1378
        %v1380 = vand.u32 %v288, 4294901760
        %1381 = vmatmul.f32.gmra.mxu0 %v1380
        %v1382 = vpop.f32.mrf.mxu0
        %v1383 = vadd.f32 %v1346, %v1382
        %1384 = vdwg.mxu0
        %v1385 = vand.u32 %v359, 4294901760
        %1386 = vmatpush.msra.mxu0 %v1385
        %v1387 = vand.u32 %v357, 4294901760
        %1388 = vmatpush.msra.mxu0 %v1387
        %v1389 = vand.u32 %v355, 4294901760
        %1390 = vmatpush.msra.mxu0 %v1389
        %v1391 = vand.u32 %v353, 4294901760
        %1392 = vmatpush.msra.mxu0 %v1391
        %v1393 = vand.u32 %v351, 4294901760
        %1394 = vmatpush.msra.mxu0 %v1393
        %v1395 = vand.u32 %v349, 4294901760
        %1396 = vmatpush.msra.mxu0 %v1395
        %v1397 = vand.u32 %v347, 4294901760
        %1398 = vmatpush.msra.mxu0 %v1397
        %v1399 = vand.u32 %v345, 4294901760
        %1400 = vmatpush.msra.mxu0 %v1399
        %v1401 = vand.u32 %v343, 4294901760
        %1402 = vmatpush.msra.mxu0 %v1401
        %v1403 = vand.u32 %v341, 4294901760
        %1404 = vmatpush.msra.mxu0 %v1403
        %v1405 = vand.u32 %v339, 4294901760
        %1406 = vmatpush.msra.mxu0 %v1405
        %v1407 = vand.u32 %v337, 4294901760
        %1408 = vmatpush.msra.mxu0 %v1407
        %v1409 = vand.u32 %v335, 4294901760
        %1410 = vmatpush.msra.mxu0 %v1409
        %v1411 = vand.u32 %v333, 4294901760
        %1412 = vmatpush.msra.mxu0 %v1411
        %v1413 = vand.u32 %v331, 4294901760
        %1414 = vmatpush.msra.mxu0 %v1413
        %v1415 = vand.u32 %v329, 4294901760
        %1416 = vmatpush.msra.mxu0 %v1415
        %v1417 = vand.u32 %v295, 4294901760
        %v1418 = vsub.f32 %v295, %v1417
        %v1419 = vand.u32 %v1418, 4294901760
        %v1420 = vsub.f32 %v1418, %v1419
        %v1421 = vand.u32 %v1420, 4294901760
        %1422 = vmatmul.f32.gmra.mxu0 %v1421
        %v1423 = vpop.f32.mrf.mxu0
        %v1424 = vadd.f32 %v1383, %v1423
        %1425 = vdwg.mxu0
        %v1426 = vand.u32 %v359, 4294901760
        %v1427 = vsub.f32 %v359, %v1426
        %v1428 = vand.u32 %v1427, 4294901760
        %v1429 = vsub.f32 %v1427, %v1428
        %v1430 = vand.u32 %v1429, 4294901760
        %1431 = vmatpush.msra.mxu0 %v1430
        %v1432 = vand.u32 %v357, 4294901760
        %v1433 = vsub.f32 %v357, %v1432
        %v1434 = vand.u32 %v1433, 4294901760
        %v1435 = vsub.f32 %v1433, %v1434
        %v1436 = vand.u32 %v1435, 4294901760
        %1437 = vmatpush.msra.mxu0 %v1436
        %v1438 = vand.u32 %v355, 4294901760
        %v1439 = vsub.f32 %v355, %v1438
        %v1440 = vand.u32 %v1439, 4294901760
        %v1441 = vsub.f32 %v1439, %v1440
        %v1442 = vand.u32 %v1441, 4294901760
        %1443 = vmatpush.msra.mxu0 %v1442
        %v1444 = vand.u32 %v353, 4294901760
        %v1445 = vsub.f32 %v353, %v1444
        %v1446 = vand.u32 %v1445, 4294901760
        %v1447 = vsub.f32 %v1445, %v1446
        %v1448 = vand.u32 %v1447, 4294901760
        %1449 = vmatpush.msra.mxu0 %v1448
        %v1450 = vand.u32 %v351, 4294901760
        %v1451 = vsub.f32 %v351, %v1450
        %v1452 = vand.u32 %v1451, 4294901760
        %v1453 = vsub.f32 %v1451, %v1452
        %v1454 = vand.u32 %v1453, 4294901760
        %1455 = vmatpush.msra.mxu0 %v1454
        %v1456 = vand.u32 %v349, 4294901760
        %v1457 = vsub.f32 %v349, %v1456
        %v1458 = vand.u32 %v1457, 4294901760
        %v1459 = vsub.f32 %v1457, %v1458
        %v1460 = vand.u32 %v1459, 4294901760
        %1461 = vmatpush.msra.mxu0 %v1460
        %v1462 = vand.u32 %v347, 4294901760
        %v1463 = vsub.f32 %v347, %v1462
        %v1464 = vand.u32 %v1463, 4294901760
        %v1465 = vsub.f32 %v1463, %v1464
        %v1466 = vand.u32 %v1465, 4294901760
        %1467 = vmatpush.msra.mxu0 %v1466
        %v1468 = vand.u32 %v345, 4294901760
        %v1469 = vsub.f32 %v345, %v1468
        %v1470 = vand.u32 %v1469, 4294901760
        %v1471 = vsub.f32 %v1469, %v1470
        %v1472 = vand.u32 %v1471, 4294901760
        %1473 = vmatpush.msra.mxu0 %v1472
        %v1474 = vand.u32 %v343, 4294901760
        %v1475 = vsub.f32 %v343, %v1474
        %v1476 = vand.u32 %v1475, 4294901760
        %v1477 = vsub.f32 %v1475, %v1476
        %v1478 = vand.u32 %v1477, 4294901760
        %1479 = vmatpush.msra.mxu0 %v1478
        %v1480 = vand.u32 %v341, 4294901760
        %v1481 = vsub.f32 %v341, %v1480
        %v1482 = vand.u32 %v1481, 4294901760
        %v1483 = vsub.f32 %v1481, %v1482
        %v1484 = vand.u32 %v1483, 4294901760
        %1485 = vmatpush.msra.mxu0 %v1484
        %v1486 = vand.u32 %v339, 4294901760
        %v1487 = vsub.f32 %v339, %v1486
        %v1488 = vand.u32 %v1487, 4294901760
        %v1489 = vsub.f32 %v1487, %v1488
        %v1490 = vand.u32 %v1489, 4294901760
        %1491 = vmatpush.msra.mxu0 %v1490
        %v1492 = vand.u32 %v337, 4294901760
        %v1493 = vsub.f32 %v337, %v1492
        %v1494 = vand.u32 %v1493, 4294901760
        %v1495 = vsub.f32 %v1493, %v1494
        %v1496 = vand.u32 %v1495, 4294901760
        %1497 = vmatpush.msra.mxu0 %v1496
        %v1498 = vand.u32 %v335, 4294901760
        %v1499 = vsub.f32 %v335, %v1498
        %v1500 = vand.u32 %v1499, 4294901760
        %v1501 = vsub.f32 %v1499, %v1500
        %v1502 = vand.u32 %v1501, 4294901760
        %1503 = vmatpush.msra.mxu0 %v1502
        %v1504 = vand.u32 %v333, 4294901760
        %v1505 = vsub.f32 %v333, %v1504
        %v1506 = vand.u32 %v1505, 4294901760
        %v1507 = vsub.f32 %v1505, %v1506
        %v1508 = vand.u32 %v1507, 4294901760
        %1509 = vmatpush.msra.mxu0 %v1508
        %v1510 = vand.u32 %v331, 4294901760
        %v1511 = vsub.f32 %v331, %v1510
        %v1512 = vand.u32 %v1511, 4294901760
        %v1513 = vsub.f32 %v1511, %v1512
        %v1514 = vand.u32 %v1513, 4294901760
        %1515 = vmatpush.msra.mxu0 %v1514
        %v1516 = vand.u32 %v329, 4294901760
        %v1517 = vsub.f32 %v329, %v1516
        %v1518 = vand.u32 %v1517, 4294901760
        %v1519 = vsub.f32 %v1517, %v1518
        %v1520 = vand.u32 %v1519, 4294901760
        %1521 = vmatpush.msra.mxu0 %v1520
        %v1522 = vand.u32 %v295, 4294901760
        %1523 = vmatmul.f32.gmra.mxu0 %v1522
        %v1524 = vpop.f32.mrf.mxu0
        %v1525 = vadd.f32 %v1424, %v1524
        %1526 = vdwg.mxu0
        %v1527 = vand.u32 %v359, 4294901760
        %v1528 = vsub.f32 %v359, %v1527
        %1529 = vmatpush.msra.mxu0 %v1528
        %v1530 = vand.u32 %v357, 4294901760
        %v1531 = vsub.f32 %v357, %v1530
        %1532 = vmatpush.msra.mxu0 %v1531
        %v1533 = vand.u32 %v355, 4294901760
        %v1534 = vsub.f32 %v355, %v1533
        %1535 = vmatpush.msra.mxu0 %v1534
        %v1536 = vand.u32 %v353, 4294901760
        %v1537 = vsub.f32 %v353, %v1536
        %1538 = vmatpush.msra.mxu0 %v1537
        %v1539 = vand.u32 %v351, 4294901760
        %v1540 = vsub.f32 %v351, %v1539
        %1541 = vmatpush.msra.mxu0 %v1540
        %v1542 = vand.u32 %v349, 4294901760
        %v1543 = vsub.f32 %v349, %v1542
        %1544 = vmatpush.msra.mxu0 %v1543
        %v1545 = vand.u32 %v347, 4294901760
        %v1546 = vsub.f32 %v347, %v1545
        %1547 = vmatpush.msra.mxu0 %v1546
        %v1548 = vand.u32 %v345, 4294901760
        %v1549 = vsub.f32 %v345, %v1548
        %1550 = vmatpush.msra.mxu0 %v1549
        %v1551 = vand.u32 %v343, 4294901760
        %v1552 = vsub.f32 %v343, %v1551
        %1553 = vmatpush.msra.mxu0 %v1552
        %v1554 = vand.u32 %v341, 4294901760
        %v1555 = vsub.f32 %v341, %v1554
        %1556 = vmatpush.msra.mxu0 %v1555
        %v1557 = vand.u32 %v339, 4294901760
        %v1558 = vsub.f32 %v339, %v1557
        %1559 = vmatpush.msra.mxu0 %v1558
        %v1560 = vand.u32 %v337, 4294901760
        %v1561 = vsub.f32 %v337, %v1560
        %1562 = vmatpush.msra.mxu0 %v1561
        %v1563 = vand.u32 %v335, 4294901760
        %v1564 = vsub.f32 %v335, %v1563
        %1565 = vmatpush.msra.mxu0 %v1564
        %v1566 = vand.u32 %v333, 4294901760
        %v1567 = vsub.f32 %v333, %v1566
        %1568 = vmatpush.msra.mxu0 %v1567
        %v1569 = vand.u32 %v331, 4294901760
        %v1570 = vsub.f32 %v331, %v1569
        %1571 = vmatpush.msra.mxu0 %v1570
        %v1572 = vand.u32 %v329, 4294901760
        %v1573 = vsub.f32 %v329, %v1572
        %1574 = vmatpush.msra.mxu0 %v1573
        %v1575 = vand.u32 %v295, 4294901760
        %v1576 = vsub.f32 %v295, %v1575
        %1577 = vmatmul.f32.gmra.mxu0 %v1576
        %v1578 = vpop.f32.mrf.mxu0
        %v1579 = vadd.f32 %v1525, %v1578
        %1580 = vdwg.mxu0
        %v1581 = vand.u32 %v359, 4294901760
        %1582 = vmatpush.msra.mxu0 %v1581
        %v1583 = vand.u32 %v357, 4294901760
        %1584 = vmatpush.msra.mxu0 %v1583
        %v1585 = vand.u32 %v355, 4294901760
        %1586 = vmatpush.msra.mxu0 %v1585
        %v1587 = vand.u32 %v353, 4294901760
        %1588 = vmatpush.msra.mxu0 %v1587
        %v1589 = vand.u32 %v351, 4294901760
        %1590 = vmatpush.msra.mxu0 %v1589
        %v1591 = vand.u32 %v349, 4294901760
        %1592 = vmatpush.msra.mxu0 %v1591
        %v1593 = vand.u32 %v347, 4294901760
        %1594 = vmatpush.msra.mxu0 %v1593
        %v1595 = vand.u32 %v345, 4294901760
        %1596 = vmatpush.msra.mxu0 %v1595
        %v1597 = vand.u32 %v343, 4294901760
        %1598 = vmatpush.msra.mxu0 %v1597
        %v1599 = vand.u32 %v341, 4294901760
        %1600 = vmatpush.msra.mxu0 %v1599
        %v1601 = vand.u32 %v339, 4294901760
        %1602 = vmatpush.msra.mxu0 %v1601
        %v1603 = vand.u32 %v337, 4294901760
        %1604 = vmatpush.msra.mxu0 %v1603
        %v1605 = vand.u32 %v335, 4294901760
        %1606 = vmatpush.msra.mxu0 %v1605
        %v1607 = vand.u32 %v333, 4294901760
        %1608 = vmatpush.msra.mxu0 %v1607
        %v1609 = vand.u32 %v331, 4294901760
        %1610 = vmatpush.msra.mxu0 %v1609
        %v1611 = vand.u32 %v329, 4294901760
        %1612 = vmatpush.msra.mxu0 %v1611
        %v1613 = vand.u32 %v295, 4294901760
        %v1614 = vsub.f32 %v295, %v1613
        %v1615 = vand.u32 %v1614, 4294901760
        %1616 = vmatmul.f32.gmra.mxu0 %v1615
        %v1617 = vpop.f32.mrf.mxu0
        %v1618 = vadd.f32 %v1579, %v1617
        %1619 = vdwg.mxu0
        %v1620 = vand.u32 %v359, 4294901760
        %v1621 = vsub.f32 %v359, %v1620
        %v1622 = vand.u32 %v1621, 4294901760
        %1623 = vmatpush.msra.mxu0 %v1622
        %v1624 = vand.u32 %v357, 4294901760
        %v1625 = vsub.f32 %v357, %v1624
        %v1626 = vand.u32 %v1625, 4294901760
        %1627 = vmatpush.msra.mxu0 %v1626
        %v1628 = vand.u32 %v355, 4294901760
        %v1629 = vsub.f32 %v355, %v1628
        %v1630 = vand.u32 %v1629, 4294901760
        %1631 = vmatpush.msra.mxu0 %v1630
        %v1632 = vand.u32 %v353, 4294901760
        %v1633 = vsub.f32 %v353, %v1632
        %v1634 = vand.u32 %v1633, 4294901760
        %1635 = vmatpush.msra.mxu0 %v1634
        %v1636 = vand.u32 %v351, 4294901760
        %v1637 = vsub.f32 %v351, %v1636
        %v1638 = vand.u32 %v1637, 4294901760
        %1639 = vmatpush.msra.mxu0 %v1638
        %v1640 = vand.u32 %v349, 4294901760
        %v1641 = vsub.f32 %v349, %v1640
        %v1642 = vand.u32 %v1641, 4294901760
        %1643 = vmatpush.msra.mxu0 %v1642
        %v1644 = vand.u32 %v347, 4294901760
        %v1645 = vsub.f32 %v347, %v1644
        %v1646 = vand.u32 %v1645, 4294901760
        %1647 = vmatpush.msra.mxu0 %v1646
        %v1648 = vand.u32 %v345, 4294901760
        %v1649 = vsub.f32 %v345, %v1648
        %v1650 = vand.u32 %v1649, 4294901760
        %1651 = vmatpush.msra.mxu0 %v1650
        %v1652 = vand.u32 %v343, 4294901760
        %v1653 = vsub.f32 %v343, %v1652
        %v1654 = vand.u32 %v1653, 4294901760
        %1655 = vmatpush.msra.mxu0 %v1654
        %v1656 = vand.u32 %v341, 4294901760
        %v1657 = vsub.f32 %v341, %v1656
        %v1658 = vand.u32 %v1657, 4294901760
        %1659 = vmatpush.msra.mxu0 %v1658
        %v1660 = vand.u32 %v339, 4294901760
        %v1661 = vsub.f32 %v339, %v1660
        %v1662 = vand.u32 %v1661, 4294901760
        %1663 = vmatpush.msra.mxu0 %v1662
        %v1664 = vand.u32 %v337, 4294901760
        %v1665 = vsub.f32 %v337, %v1664
        %v1666 = vand.u32 %v1665, 4294901760
        %1667 = vmatpush.msra.mxu0 %v1666
        %v1668 = vand.u32 %v335, 4294901760
        %v1669 = vsub.f32 %v335, %v1668
        %v1670 = vand.u32 %v1669, 4294901760
        %1671 = vmatpush.msra.mxu0 %v1670
        %v1672 = vand.u32 %v333, 4294901760
        %v1673 = vsub.f32 %v333, %v1672
        %v1674 = vand.u32 %v1673, 4294901760
        %1675 = vmatpush.msra.mxu0 %v1674
        %v1676 = vand.u32 %v331, 4294901760
        %v1677 = vsub.f32 %v331, %v1676
        %v1678 = vand.u32 %v1677, 4294901760
        %1679 = vmatpush.msra.mxu0 %v1678
        %v1680 = vand.u32 %v329, 4294901760
        %v1681 = vsub.f32 %v329, %v1680
        %v1682 = vand.u32 %v1681, 4294901760
        %1683 = vmatpush.msra.mxu0 %v1682
        %v1684 = vand.u32 %v295, 4294901760
        %1685 = vmatmul.f32.gmra.mxu0 %v1684
        %v1686 = vpop.f32.mrf.mxu0
        %v1687 = vadd.f32 %v1618, %v1686
        %1688 = vdwg.mxu0
        %v1689 = vand.u32 %v359, 4294901760
        %1690 = vmatpush.msra.mxu0 %v1689
        %v1691 = vand.u32 %v357, 4294901760
        %1692 = vmatpush.msra.mxu0 %v1691
        %v1693 = vand.u32 %v355, 4294901760
        %1694 = vmatpush.msra.mxu0 %v1693
        %v1695 = vand.u32 %v353, 4294901760
        %1696 = vmatpush.msra.mxu0 %v1695
        %v1697 = vand.u32 %v351, 4294901760
        %1698 = vmatpush.msra.mxu0 %v1697
        %v1699 = vand.u32 %v349, 4294901760
        %1700 = vmatpush.msra.mxu0 %v1699
        %v1701 = vand.u32 %v347, 4294901760
        %1702 = vmatpush.msra.mxu0 %v1701
        %v1703 = vand.u32 %v345, 4294901760
        %1704 = vmatpush.msra.mxu0 %v1703
        %v1705 = vand.u32 %v343, 4294901760
        %1706 = vmatpush.msra.mxu0 %v1705
        %v1707 = vand.u32 %v341, 4294901760
        %1708 = vmatpush.msra.mxu0 %v1707
        %v1709 = vand.u32 %v339, 4294901760
        %1710 = vmatpush.msra.mxu0 %v1709
        %v1711 = vand.u32 %v337, 4294901760
        %1712 = vmatpush.msra.mxu0 %v1711
        %v1713 = vand.u32 %v335, 4294901760
        %1714 = vmatpush.msra.mxu0 %v1713
        %v1715 = vand.u32 %v333, 4294901760
        %1716 = vmatpush.msra.mxu0 %v1715
        %v1717 = vand.u32 %v331, 4294901760
        %1718 = vmatpush.msra.mxu0 %v1717
        %v1719 = vand.u32 %v329, 4294901760
        %1720 = vmatpush.msra.mxu0 %v1719
        %v1721 = vand.u32 %v295, 4294901760
        %1722 = vmatmul.f32.gmra.mxu0 %v1721
        %v1723 = vpop.f32.mrf.mxu0
        %v1724 = vadd.f32 %v1687, %v1723
        %1725 = vdwg.mxu0
        %v1726 = vmax.f32 %v1042, 0.0
        %v1727 = vmax.f32 %v1724, 0.0
        %v1728 = vperm.slane %v1726, 0
        %v1729 = vperm.slane %v1727, 0
        %v1732 = vrot.slane %v1729, 4
        %v1733 = vsel %vm281, %v1728, %v1732
        %v1735 = vmul.f32 %v274, %v1733
        %v1736 = vadd.f32 %v1735, %v273
        %1737 = vst [vmem:[%s272] sm:$0xff] %v1736
        %s1738 = sand.u32 %s127, 1
        %s1739 = scalar_lea.sflag [#allocation5], %s1738
        %s1740 = sand.u32 %s127, 1
        %s1741 = smul.addr %s1740, 8
        %s1742 = scalar_lea.vmem [#allocation9], %s1741
        // Predicated region
        $region49: #{tpu_custom_call.1} parent=35 // pred_check
          %p1743 = pneg %p137
        $region50: #{tpu_custom_call.1} parent=35 // pred_check_branch
          %1745 = sbr.rel (%p1743) target = $region52
        $region51: #{tpu_custom_call.1} parent=35 // pred_region
          %1747 = vsyncadd %s1739, 0
          %s1748 = smul.addr %s25, 2
          %s1749 = smul.addr %s1748, 4
          %s1750 = scalar_lea.hbm %s4, %s1749
          %s1752 = sshll.u32 %s1742, 4
          %s1753 = int_to_ptr.vmem [resolvable:$true] %s1752
          %s1754 = sshll.u32 %s1750, 4
          %s1755 = int_to_ptr.hbm [resolvable:$true] %s1754
          %1757 = dma.vmem_to_hbm [thread:$0]  %s1753, 128, %s1755, %s1739
        $region52: #{tpu_custom_call.1} parent=35 // pred_fallthru
          _
      $region36: #{tpu_custom_call.1} parent=5 // pred_fallthru
        _
      %p1758 = scmp.le.s32.totalorder 2, %s20
      // Predicated region
      $region53: #{tpu_custom_call.1} parent=5 // pred_check
        %p1759 = pneg %p1758
      $region54: #{tpu_custom_call.1} parent=5 // pred_check_branch
        %1761 = sbr.rel (%p1759) target = $region56
      $region55: #{tpu_custom_call.1} parent=5 // pred_region
        %s1762 = ssub.s32 %s20, 2
        // Predicated region
        $region57: #{tpu_custom_call.1} parent=55 // pred_check
          %p1763 = pneg %p143
        $region58: #{tpu_custom_call.1} parent=55 // pred_check_branch
          %1765 = sbr.rel (%p1763) target = $region60
        $region59: #{tpu_custom_call.1} parent=55 // pred_region
          %s1766 = sand.u32 %s128, 1
          %s1767 = scalar_lea.sflag [#allocation5], %s1766
          %s1768 = sand.u32 %s128, 1
          %s1769 = smul.addr %s1768, 8
          %s1770 = scalar_lea.vmem [#allocation9], %s1769
          %1772 = dma.done %s1767, 128
        $region60: #{tpu_custom_call.1} parent=55 // pred_fallthru
          _
      $region56: #{tpu_custom_call.1} parent=5 // pred_fallthru
        _
    $region6: #{tpu_custom_call.1} parent=1 // loop_footer
      %s24 = sadd.s32 1, %s20
    $region7: #{tpu_custom_call.1} parent=1 // loop_footer_branch
      %19 = sbr.rel target = $region3
    $region8: #{tpu_custom_call.1} parent=1 // loop_exit
      _
    %1773 = vsyncpa [#allocation4], 1
    %s1774 = scalar_lea.sflag [#allocation4], 1
    %1775 = vsyncpa %s1774, 1
    %1776 = vsyncpa [#allocation7], 1
    %s1777 = scalar_lea.sflag [#allocation7], 1
    %1778 = vsyncpa %s1777, 1
    %1779 = vsyncpa [#allocation5], 1
    %s1780 = scalar_lea.sflag [#allocation5], 1
    %1781 = vsyncpa %s1780, 1

</llo_original>
